<compile_context>
chip_gen: v7x
topology: tpu7x:2x2x1
jax: 0.10.0
libtpu: 0.0.40
codegen_flags: <defaults>
</compile_context>

<pallas_src>
import jax
import jax.numpy as jnp
from jax import lax
from jax.experimental import pallas as pl
from jax.experimental.pallas import tpu as pltpu

H = W = 7
HP, WP = H + 2, W + 2                    # padded spatial dims (9, 9)
CIN = 128
COUT = 32
C_TOTAL = 512 + 32 + 32 + COUT + 32      # 640
EPS = 1e-5
NPOS = H * W                             # 49 output positions
NPAD = HP * WP                           # 81 padded positions (flattened)
NROW = (H - 1) * WP + W                  # 61 padded-width rows covering all valid outputs


def fused_kernel(xp_ref, w_ref, x313_ref, x320_ref, x327_ref, x341_ref,
                 g_ref, b_ref, o_ref, conv_sc):
    # ---- Conv2d 3x3 (pad=1) as a single K=1152 MXU matmul -------------------
    # xp is the zero-padded input flattened over (H+2, W+2): row i*9+j = xp[i,j,:].
    # For tap (kh,kw) the contiguous slice starting at kh*9+kw gives, at padded-
    # width position p = r*9 + c, exactly xp[r+kh, c+kw] whenever c <= 6; the
    # c = 7,8 rows are wrap-around garbage and are discarded below.
    xp = xp_ref[...]                                             # (81, 128)
    taps = [xp[kh * WP + kw: kh * WP + kw + NROW, :]             # shifted views, VMEM only
            for kh in range(3) for kw in range(3)]
    patches = jnp.concatenate(taps, axis=1)                      # (61, 1152)
    conv61 = jnp.dot(patches, w_ref[...],
                     preferred_element_type=jnp.float32)         # (61, 32)

    # keep only the valid (c <= 6) columns: image row r lives at rows r*9 .. r*9+6
    for r in range(H):
        conv_sc[r * W:(r + 1) * W, :] = conv61[r * WP: r * WP + W, :]
    conv = conv_sc[...]                                          # (49, 32)

    # ---- channel concat, entirely in VMEM -----------------------------------
    cat = jnp.concatenate(
        [x313_ref[...], x320_ref[...], x327_ref[...], conv, x341_ref[...]],
        axis=1)                                                  # (49, 640)

    # ---- BatchNorm2d, training-mode batch stats (biased variance) -----------
    inv_n = 1.0 / NPOS
    mean = jnp.sum(cat, axis=0, keepdims=True) * inv_n           # (1, 640)
    var = jnp.sum(cat * cat, axis=0, keepdims=True) * inv_n - mean * mean
    var = jnp.maximum(var, 0.0)                                  # guard cancellation -> no NaN
    inv = lax.rsqrt(var + EPS)                                   # EUP transcendental
    # single lane-dense (49, 640) store
    o_ref[...] = (cat - mean) * (inv * g_ref[...]) + b_ref[...]


def forward(x333, x313, x320, x327, x341, conv_w, gamma, beta):
    to_rows = lambda t: jnp.transpose(t, (0, 2, 3, 1)).reshape(NPOS, t.shape[1])

    # padded conv input, channels-last, flattened over (H+2, W+2)
    x333_hwc = jnp.transpose(x333, (0, 2, 3, 1))[0]              # (7, 7, 128)
    xp2d = jnp.pad(x333_hwc, ((1, 1), (1, 1), (0, 0))).reshape(NPAD, CIN)

    # weights rearranged to (kh, kw, cin) x cout to match the in-kernel tap order
    w2d = jnp.transpose(conv_w, (2, 3, 1, 0)).reshape(9 * CIN, COUT)

    y = pl.pallas_call(
        fused_kernel,
        out_shape=jax.ShapeDtypeStruct((NPOS, C_TOTAL), jnp.float32),
        grid=(1,),
        in_specs=[
            pl.BlockSpec((NPAD, CIN), lambda i: (0, 0)),
            pl.BlockSpec((9 * CIN, COUT), lambda i: (0, 0)),
            pl.BlockSpec((NPOS, 512), lambda i: (0, 0)),
            pl.BlockSpec((NPOS, 32), lambda i: (0, 0)),
            pl.BlockSpec((NPOS, 32), lambda i: (0, 0)),
            pl.BlockSpec((NPOS, 32), lambda i: (0, 0)),
            pl.BlockSpec((1, C_TOTAL), lambda i: (0, 0)),
            pl.BlockSpec((1, C_TOTAL), lambda i: (0, 0)),
        ],
        out_specs=pl.BlockSpec((NPOS, C_TOTAL), lambda i: (0, 0)),
        scratch_shapes=[pltpu.VMEM((NPOS, COUT), jnp.float32)],
    )(xp2d, w2d, to_rows(x313), to_rows(x320), to_rows(x327), to_rows(x341),
      gamma.reshape(1, C_TOTAL), beta.reshape(1, C_TOTAL))

    y = y.reshape(1, H, W, C_TOTAL)
    return jnp.transpose(y, (0, 3, 1, 2))                        # back to NCHW


def reference(x333, x313, x320, x327, x341, conv_w, gamma, beta):
    conv = lax.conv_general_dilated(
        x333, conv_w, window_strides=(1, 1), padding=((1, 1), (1, 1)),
        dimension_numbers=("NCHW", "OIHW", "NCHW"),
        precision=lax.Precision.HIGHEST)
    cat = jnp.concatenate([x313, x320, x327, conv, x341], axis=1)
    mean = jnp.mean(cat, axis=(0, 2, 3), keepdims=True)
    var = jnp.mean((cat - mean) ** 2, axis=(0, 2, 3), keepdims=True)
    g = gamma.reshape(1, -1, 1, 1)
    b = beta.reshape(1, -1, 1, 1)
    return (cat - mean) * lax.rsqrt(var + EPS) * g + b


if __name__ == "__main__":
    key = jax.random.PRNGKey(0)
    k1, k2, k3, k4, k5, kw = jax.random.split(key, 6)

    # input shapes implied by the PyTorch module
    x313 = jax.random.normal(k1, (1, 512, H, W), jnp.float32)
    x320 = jax.random.normal(k2, (1, 32, H, W), jnp.float32)
    x327 = jax.random.normal(k3, (1, 32, H, W), jnp.float32)
    x333 = jax.random.normal(k4, (1, CIN, H, W), jnp.float32)
    x341 = jax.random.normal(k5, (1, 32, H, W), jnp.float32)

    conv_w = jax.random.normal(kw, (COUT, CIN, 3, 3), jnp.float32) * \
        (2.0 / (CIN * 9)) ** 0.5                                  # kaiming-like scale
    gamma = jnp.ones((C_TOTAL,), jnp.float32)                     # BN affine defaults
    beta = jnp.zeros((C_TOTAL,), jnp.float32)
    # TODO(synk): running_mean/running_var (momentum=0.1) buffer updates are not
    # modeled; they do not affect the training-mode forward output.

    out = jax.jit(forward)(x333, x313, x320, x327, x341, conv_w, gamma, beta)
    jax.block_until_ready(out)
    assert out.shape == (1, C_TOTAL, H, W) and out.dtype == jnp.float32

    ref = reference(x333, x313, x320, x327, x341, conv_w, gamma, beta)
    assert jnp.allclose(out, ref, atol=3e-2, rtol=3e-2), \
        float(jnp.max(jnp.abs(out - ref)))

    print("KERNEL_OK")
</pallas_src>

<mosaic_0001>
module attributes {stable_mosaic.version = 11 : i64} {
  func.func @fused_kernel(%arg0: i32, %arg1: memref<81x128xf32, #tpu.memory_space<vmem>>, %arg2: memref<1152x32xf32, #tpu.memory_space<vmem>>, %arg3: memref<49x512xf32, #tpu.memory_space<vmem>>, %arg4: memref<49x32xf32, #tpu.memory_space<vmem>>, %arg5: memref<49x32xf32, #tpu.memory_space<vmem>>, %arg6: memref<49x32xf32, #tpu.memory_space<vmem>>, %arg7: memref<1x640xf32, #tpu.memory_space<vmem>>, %arg8: memref<1x640xf32, #tpu.memory_space<vmem>>, %arg9: memref<49x640xf32, #tpu.memory_space<vmem>>, %arg10: memref<49x32xf32, #tpu.memory_space<vmem>>) attributes {dimension_semantics = [#tpu.dimension_semantics<arbitrary>], iteration_bounds = array<i64: 1>, scalar_prefetch = 0 : i64, scratch_operands = 1 : i64, tpu.core_type = #tpu.core_type<tc>, window_params = [{pipeline_mode = #tpu.pipeline_mode<synchronous>, transform_indices = @transform_0, window_bounds = array<i64: 81, 128>}, {pipeline_mode = #tpu.pipeline_mode<synchronous>, transform_indices = @transform_1, window_bounds = array<i64: 1152, 32>}, {pipeline_mode = #tpu.pipeline_mode<synchronous>, transform_indices = @transform_2, window_bounds = array<i64: 49, 512>}, {pipeline_mode = #tpu.pipeline_mode<synchronous>, transform_indices = @transform_3, window_bounds = array<i64: 49, 32>}, {pipeline_mode = #tpu.pipeline_mode<synchronous>, transform_indices = @transform_4, window_bounds = array<i64: 49, 32>}, {pipeline_mode = #tpu.pipeline_mode<synchronous>, transform_indices = @transform_5, window_bounds = array<i64: 49, 32>}, {pipeline_mode = #tpu.pipeline_mode<synchronous>, transform_indices = @transform_6, window_bounds = array<i64: 1, 640>}, {pipeline_mode = #tpu.pipeline_mode<synchronous>, transform_indices = @transform_7, window_bounds = array<i64: 1, 640>}, {pipeline_mode = #tpu.pipeline_mode<synchronous>, transform_indices = @transform_8, window_bounds = array<i64: 49, 640>}]} {
    %c0 = arith.constant 0 : index
    %c0_0 = arith.constant 0 : index
    %0 = vector.load %arg1[%c0, %c0_0] : memref<81x128xf32, #tpu.memory_space<vmem>>, vector<81x128xf32>
    %1 = vector.extract_strided_slice %0 {offsets = [0, 0], sizes = [61, 128], strides = [1, 1]} : vector<81x128xf32> to vector<61x128xf32>
    %2 = vector.extract_strided_slice %0 {offsets = [1, 0], sizes = [61, 128], strides = [1, 1]} : vector<81x128xf32> to vector<61x128xf32>
    %3 = vector.extract_strided_slice %0 {offsets = [2, 0], sizes = [61, 128], strides = [1, 1]} : vector<81x128xf32> to vector<61x128xf32>
    %4 = vector.extract_strided_slice %0 {offsets = [9, 0], sizes = [61, 128], strides = [1, 1]} : vector<81x128xf32> to vector<61x128xf32>
    %5 = vector.extract_strided_slice %0 {offsets = [10, 0], sizes = [61, 128], strides = [1, 1]} : vector<81x128xf32> to vector<61x128xf32>
    %6 = vector.extract_strided_slice %0 {offsets = [11, 0], sizes = [61, 128], strides = [1, 1]} : vector<81x128xf32> to vector<61x128xf32>
    %7 = vector.extract_strided_slice %0 {offsets = [18, 0], sizes = [61, 128], strides = [1, 1]} : vector<81x128xf32> to vector<61x128xf32>
    %8 = vector.extract_strided_slice %0 {offsets = [19, 0], sizes = [61, 128], strides = [1, 1]} : vector<81x128xf32> to vector<61x128xf32>
    %9 = vector.extract_strided_slice %0 {offsets = [20, 0], sizes = [61, 128], strides = [1, 1]} : vector<81x128xf32> to vector<61x128xf32>
    %10 = tpu.concatenate %1, %2, %3, %4, %5, %6, %7, %8, %9 in 1 : vector<61x128xf32>, vector<61x128xf32>, vector<61x128xf32>, vector<61x128xf32>, vector<61x128xf32>, vector<61x128xf32>, vector<61x128xf32>, vector<61x128xf32>, vector<61x128xf32> -> vector<61x1152xf32>
    %c0_1 = arith.constant 0 : index
    %c0_2 = arith.constant 0 : index
    %11 = vector.load %arg2[%c0_1, %c0_2] : memref<1152x32xf32, #tpu.memory_space<vmem>>, vector<1152x32xf32>
    %cst = arith.constant dense<0.000000e+00> : vector<61x32xf32>
    %12 = tpu.matmul %10, %11, %cst {dimension_numbers = #tpu.dot_dimension_numbers<[1], [0], [0], [1], [0, 0, 1, 1], [], []>} : vector<61x1152xf32>, vector<1152x32xf32>, vector<61x32xf32> -> vector<61x32xf32>
    %13 = vector.extract_strided_slice %12 {offsets = [0, 0], sizes = [7, 32], strides = [1, 1]} : vector<61x32xf32> to vector<7x32xf32>
    %c0_3 = arith.constant 0 : index
    %c0_4 = arith.constant 0 : index
    %14 = vector.load %arg10[%c0_3, %c0_4] : memref<49x32xf32, #tpu.memory_space<vmem>>, vector<7x32xf32>
    tpu.vector_store %arg10[%c0_3, %c0_4], %13 {strides = array<i32>} : memref<49x32xf32, #tpu.memory_space<vmem>>, vector<7x32xf32>,
    %15 = vector.extract_strided_slice %12 {offsets = [9, 0], sizes = [7, 32], strides = [1, 1]} : vector<61x32xf32> to vector<7x32xf32>
    %c7 = arith.constant 7 : index
    %c0_5 = arith.constant 0 : index
    %16 = vector.load %arg10[%c7, %c0_5] : memref<49x32xf32, #tpu.memory_space<vmem>>, vector<7x32xf32>
    tpu.vector_store %arg10[%c7, %c0_5], %15 {strides = array<i32>} : memref<49x32xf32, #tpu.memory_space<vmem>>, vector<7x32xf32>,
    %17 = vector.extract_strided_slice %12 {offsets = [18, 0], sizes = [7, 32], strides = [1, 1]} : vector<61x32xf32> to vector<7x32xf32>
    %c14 = arith.constant 14 : index
    %c0_6 = arith.constant 0 : index
    %18 = vector.load %arg10[%c14, %c0_6] : memref<49x32xf32, #tpu.memory_space<vmem>>, vector<7x32xf32>
    tpu.vector_store %arg10[%c14, %c0_6], %17 {strides = array<i32>} : memref<49x32xf32, #tpu.memory_space<vmem>>, vector<7x32xf32>,
    %19 = vector.extract_strided_slice %12 {offsets = [27, 0], sizes = [7, 32], strides = [1, 1]} : vector<61x32xf32> to vector<7x32xf32>
    %c21 = arith.constant 21 : index
    %c0_7 = arith.constant 0 : index
    %20 = vector.load %arg10[%c21, %c0_7] : memref<49x32xf32, #tpu.memory_space<vmem>>, vector<7x32xf32>
    tpu.vector_store %arg10[%c21, %c0_7], %19 {strides = array<i32>} : memref<49x32xf32, #tpu.memory_space<vmem>>, vector<7x32xf32>,
    %21 = vector.extract_strided_slice %12 {offsets = [36, 0], sizes = [7, 32], strides = [1, 1]} : vector<61x32xf32> to vector<7x32xf32>
    %c28 = arith.constant 28 : index
    %c0_8 = arith.constant 0 : index
    %22 = vector.load %arg10[%c28, %c0_8] : memref<49x32xf32, #tpu.memory_space<vmem>>, vector<7x32xf32>
    tpu.vector_store %arg10[%c28, %c0_8], %21 {strides = array<i32>} : memref<49x32xf32, #tpu.memory_space<vmem>>, vector<7x32xf32>,
    %23 = vector.extract_strided_slice %12 {offsets = [45, 0], sizes = [7, 32], strides = [1, 1]} : vector<61x32xf32> to vector<7x32xf32>
    %c35 = arith.constant 35 : index
    %c0_9 = arith.constant 0 : index
    %24 = vector.load %arg10[%c35, %c0_9] : memref<49x32xf32, #tpu.memory_space<vmem>>, vector<7x32xf32>
    tpu.vector_store %arg10[%c35, %c0_9], %23 {strides = array<i32>} : memref<49x32xf32, #tpu.memory_space<vmem>>, vector<7x32xf32>,
    %25 = vector.extract_strided_slice %12 {offsets = [54, 0], sizes = [7, 32], strides = [1, 1]} : vector<61x32xf32> to vector<7x32xf32>
    %c42 = arith.constant 42 : index
    %c0_10 = arith.constant 0 : index
    %26 = vector.load %arg10[%c42, %c0_10] : memref<49x32xf32, #tpu.memory_space<vmem>>, vector<7x32xf32>
    tpu.vector_store %arg10[%c42, %c0_10], %25 {strides = array<i32>} : memref<49x32xf32, #tpu.memory_space<vmem>>, vector<7x32xf32>,
    %c0_11 = arith.constant 0 : index
    %c0_12 = arith.constant 0 : index
    %27 = vector.load %arg10[%c0_11, %c0_12] : memref<49x32xf32, #tpu.memory_space<vmem>>, vector<49x32xf32>
    %c0_13 = arith.constant 0 : index
    %c0_14 = arith.constant 0 : index
    %28 = vector.load %arg3[%c0_13, %c0_14] : memref<49x512xf32, #tpu.memory_space<vmem>>, vector<49x512xf32>
    %c0_15 = arith.constant 0 : index
    %c0_16 = arith.constant 0 : index
    %29 = vector.load %arg4[%c0_15, %c0_16] : memref<49x32xf32, #tpu.memory_space<vmem>>, vector<49x32xf32>
    %c0_17 = arith.constant 0 : index
    %c0_18 = arith.constant 0 : index
    %30 = vector.load %arg5[%c0_17, %c0_18] : memref<49x32xf32, #tpu.memory_space<vmem>>, vector<49x32xf32>
    %c0_19 = arith.constant 0 : index
    %c0_20 = arith.constant 0 : index
    %31 = vector.load %arg6[%c0_19, %c0_20] : memref<49x32xf32, #tpu.memory_space<vmem>>, vector<49x32xf32>
    %32 = tpu.concatenate %28, %29, %30, %27, %31 in 1 : vector<49x512xf32>, vector<49x32xf32>, vector<49x32xf32>, vector<49x32xf32>, vector<49x32xf32> -> vector<49x640xf32>
    %cst_21 = arith.constant dense<0.000000e+00> : vector<640xf32>
    %33 = vector.multi_reduction <add>, %32, %cst_21 [0] : vector<49x640xf32> to vector<640xf32>
    %34 = vector.shape_cast %33 : vector<640xf32> to vector<1x640xf32>
    %cst_22 = arith.constant 0.0204081628 : f32
    %35 = vector.broadcast %cst_22 : f32 to vector<1x640xf32>
    %36 = arith.mulf %34, %35 : vector<1x640xf32>
    %37 = arith.mulf %32, %32 : vector<49x640xf32>
    %cst_23 = arith.constant dense<0.000000e+00> : vector<640xf32>
    %38 = vector.multi_reduction <add>, %37, %cst_23 [0] : vector<49x640xf32> to vector<640xf32>
    %39 = vector.shape_cast %38 : vector<640xf32> to vector<1x640xf32>
    %cst_24 = arith.constant 0.0204081628 : f32
    %40 = vector.broadcast %cst_24 : f32 to vector<1x640xf32>
    %41 = arith.mulf %39, %40 : vector<1x640xf32>
    %42 = arith.mulf %36, %36 : vector<1x640xf32>
    %43 = arith.subf %41, %42 : vector<1x640xf32>
    %cst_25 = arith.constant 0.000000e+00 : f32
    %44 = vector.broadcast %cst_25 : f32 to vector<1x640xf32>
    %45 = arith.maximumf %43, %44 : vector<1x640xf32>
    %cst_26 = arith.constant 9.99999974E-6 : f32
    %46 = vector.broadcast %cst_26 : f32 to vector<1x640xf32>
    %47 = arith.addf %45, %46 : vector<1x640xf32>
    %48 = math.rsqrt %47 : vector<1x640xf32>
    %49 = vector.broadcast %36 : vector<1x640xf32> to vector<49x640xf32>
    %50 = arith.subf %32, %49 : vector<49x640xf32>
    %c0_27 = arith.constant 0 : index
    %c0_28 = arith.constant 0 : index
    %51 = vector.load %arg7[%c0_27, %c0_28] : memref<1x640xf32, #tpu.memory_space<vmem>>, vector<1x640xf32>
    %52 = arith.mulf %48, %51 : vector<1x640xf32>
    %53 = vector.broadcast %52 : vector<1x640xf32> to vector<49x640xf32>
    %54 = arith.mulf %50, %53 : vector<49x640xf32>
    %c0_29 = arith.constant 0 : index
    %c0_30 = arith.constant 0 : index
    %55 = vector.load %arg8[%c0_29, %c0_30] : memref<1x640xf32, #tpu.memory_space<vmem>>, vector<1x640xf32>
    %56 = vector.broadcast %55 : vector<1x640xf32> to vector<49x640xf32>
    %57 = arith.addf %54, %56 : vector<49x640xf32>
    %c0_31 = arith.constant 0 : index
    %c0_32 = arith.constant 0 : index
    %58 = vector.load %arg9[%c0_31, %c0_32] : memref<49x640xf32, #tpu.memory_space<vmem>>, vector<49x640xf32>
    tpu.vector_store %arg9[%c0_31, %c0_32], %57 {strides = array<i32>} : memref<49x640xf32, #tpu.memory_space<vmem>>, vector<49x640xf32>,
    return
  }
  func.func @transform_0(%arg0: i32) -> (i32, i32) {
    %c0_i32 = arith.constant 0 : i32
    %c0_i32_0 = arith.constant 0 : i32
    %c0_i32_1 = arith.constant 0 : i32
    return %c0_i32, %c0_i32_0 : i32, i32
  }
  func.func @transform_1(%arg0: i32) -> (i32, i32) {
    %c0_i32 = arith.constant 0 : i32
    %c0_i32_0 = arith.constant 0 : i32
    %c0_i32_1 = arith.constant 0 : i32
    return %c0_i32, %c0_i32_0 : i32, i32
  }
  func.func @transform_2(%arg0: i32) -> (i32, i32) {
    %c0_i32 = arith.constant 0 : i32
    %c0_i32_0 = arith.constant 0 : i32
    %c0_i32_1 = arith.constant 0 : i32
    return %c0_i32, %c0_i32_0 : i32, i32
  }
  func.func @transform_3(%arg0: i32) -> (i32, i32) {
    %c0_i32 = arith.constant 0 : i32
    %c0_i32_0 = arith.constant 0 : i32
    %c0_i32_1 = arith.constant 0 : i32
    return %c0_i32, %c0_i32_0 : i32, i32
  }
  func.func @transform_4(%arg0: i32) -> (i32, i32) {
    %c0_i32 = arith.constant 0 : i32
    %c0_i32_0 = arith.constant 0 : i32
    %c0_i32_1 = arith.constant 0 : i32
    return %c0_i32, %c0_i32_0 : i32, i32
  }
  func.func @transform_5(%arg0: i32) -> (i32, i32) {
    %c0_i32 = arith.constant 0 : i32
    %c0_i32_0 = arith.constant 0 : i32
    %c0_i32_1 = arith.constant 0 : i32
    return %c0_i32, %c0_i32_0 : i32, i32
  }
  func.func @transform_6(%arg0: i32) -> (i32, i32) {
    %c0_i32 = arith.constant 0 : i32
    %c0_i32_0 = arith.constant 0 : i32
    %c0_i32_1 = arith.constant 0 : i32
    return %c0_i32, %c0_i32_0 : i32, i32
  }
  func.func @transform_7(%arg0: i32) -> (i32, i32) {
    %c0_i32 = arith.constant 0 : i32
    %c0_i32_0 = arith.constant 0 : i32
    %c0_i32_1 = arith.constant 0 : i32
    return %c0_i32, %c0_i32_0 : i32, i32
  }
  func.func @transform_8(%arg0: i32) -> (i32, i32) {
    %c0_i32 = arith.constant 0 : i32
    %c0_i32_0 = arith.constant 0 : i32
    %c0_i32_1 = arith.constant 0 : i32
    return %c0_i32, %c0_i32_0 : i32, i32
  }
}

</mosaic_0001>

<llo_original>
// kernel: forward.1
$region0: #{forward.1}
  #allocation0 [shape = 'u32[]', space=smem, size = 0x4, offset = 0x4, fixed_abs, tag = 'smem constant byte address 0x4 - core index']
  #allocation1 [shape = 'u32[144,128]{1,0:T(1,128)}', space=vmem, size = 0x12000, scoped, tag = 'internal scratch']
  #allocation2 [shape = 'f32[49,32]{1,0:T(8,128)}', space=vmem, size = 0x7000, scoped, tag = 'scratch operand']
  %s0 = inlined_call_operand.vmem [shape: f32[81,128], index: 0, kind: input, shape index: {}]
  %s1 = inlined_call_operand.vmem [shape: f32[1152,32], index: 1, kind: input, shape index: {}]
  %s2 = inlined_call_operand.vmem [shape: f32[49,512], index: 2, kind: input, shape index: {}]
  %s3 = inlined_call_operand.vmem [shape: f32[49,32], index: 3, kind: input, shape index: {}]
  %s4 = inlined_call_operand.vmem [shape: f32[49,32], index: 4, kind: input, shape index: {}]
  %s5 = inlined_call_operand.vmem [shape: f32[49,32], index: 5, kind: input, shape index: {}]
  %s6 = inlined_call_operand.vmem [shape: f32[1,640], index: 6, kind: input, shape index: {}]
  %s7 = inlined_call_operand.vmem [shape: f32[1,640], index: 7, kind: input, shape index: {}]
  %s8 = inlined_call_operand.vmem [shape: f32[49,640], index: 8, kind: output, shape index: {}]
  %s9 = sld [smem:[#allocation0]]
  $region42: #{forward.1} parent=0
    _
  %s11 = ssub.s32 1, %s9
  %s12 = scalar_select 0, %s11, %s9
  // Predicated region
  $region2: #{forward.1} parent=0 // pred_check
    _
  $region3: #{forward.1} parent=0 // pred_check_branch
    %14 = sbr.rel (0) target = $region5
  $region4: #{forward.1} parent=0 // pred_region
    _
  $region5: #{forward.1} parent=0 // pred_fallthru
    _
  // Predicated region
  $region6: #{forward.1} parent=0 // pred_check
    _
  $region7: #{forward.1} parent=0 // pred_check_branch
    %16 = sbr.rel (0) target = $region9
  $region8: #{forward.1} parent=0 // pred_region
    _
  $region9: #{forward.1} parent=0 // pred_fallthru
    _
  // Predicated region
  $region10: #{forward.1} parent=0 // pred_check
    _
  $region11: #{forward.1} parent=0 // pred_check_branch
    %18 = sbr.rel (0) target = $region13
  $region12: #{forward.1} parent=0 // pred_region
    _
  $region13: #{forward.1} parent=0 // pred_fallthru
    _
  // Predicated region
  $region14: #{forward.1} parent=0 // pred_check
    _
  $region15: #{forward.1} parent=0 // pred_check_branch
    %20 = sbr.rel (0) target = $region17
  $region16: #{forward.1} parent=0 // pred_region
    _
  $region17: #{forward.1} parent=0 // pred_fallthru
    _
  // Predicated region
  $region18: #{forward.1} parent=0 // pred_check
    _
  $region19: #{forward.1} parent=0 // pred_check_branch
    %22 = sbr.rel (0) target = $region21
  $region20: #{forward.1} parent=0 // pred_region
    _
  $region21: #{forward.1} parent=0 // pred_fallthru
    _
  // Predicated region
  $region22: #{forward.1} parent=0 // pred_check
    _
  $region23: #{forward.1} parent=0 // pred_check_branch
    %24 = sbr.rel (0) target = $region25
  $region24: #{forward.1} parent=0 // pred_region
    _
  $region25: #{forward.1} parent=0 // pred_fallthru
    _
  // Predicated region
  $region26: #{forward.1} parent=0 // pred_check
    _
  $region27: #{forward.1} parent=0 // pred_check_branch
    %26 = sbr.rel (0) target = $region29
  $region28: #{forward.1} parent=0 // pred_region
    _
  $region29: #{forward.1} parent=0 // pred_fallthru
    _
  // Predicated region
  $region30: #{forward.1} parent=0 // pred_check
    _
  $region31: #{forward.1} parent=0 // pred_check_branch
    %28 = sbr.rel (0) target = $region33
  $region32: #{forward.1} parent=0 // pred_region
    _
  $region33: #{forward.1} parent=0 // pred_fallthru
    _
  %v29 = vld [vmem:[%s0] sm:$0xff]
  %v30 = vld [vmem:[%s0 + $0x8] sm:$0xff]
  %v31 = vld [vmem:[%s0 + $0x10] sm:$0xff]
  %v32 = vld [vmem:[%s0 + $0x18] sm:$0xff]
  %v33 = vld [vmem:[%s0 + $0x20] sm:$0xff]
  %v34 = vld [vmem:[%s0 + $0x28] sm:$0xff]
  %v35 = vld [vmem:[%s0 + $0x30] sm:$0xff]
  %v36 = vld [vmem:[%s0 + $0x38] sm:$0xff]
  %v37 = vld [vmem:[%s0 + $0x40] sm:$0xff]
  %v38 = vld [vmem:[%s0 + $0x48] sm:$0xff]
  %v39 = vld [vmem:[%s0 + $0x50] sm:$0x1]
  %vm48 = vcmask 1046528
  %v49 = vrot.slane %v29, 1
  %v50 = vrot.slane %v30, 1
  %v51 = vsel %vm48, %v49, %v50
  %v52 = vrot.slane %v31, 1
  %v53 = vsel %vm48, %v50, %v52
  %v54 = vrot.slane %v32, 1
  %v55 = vsel %vm48, %v52, %v54
  %v56 = vrot.slane %v33, 1
  %v57 = vsel %vm48, %v54, %v56
  %v58 = vrot.slane %v34, 1
  %v59 = vsel %vm48, %v56, %v58
  %v60 = vrot.slane %v35, 1
  %v61 = vsel %vm48, %v58, %v60
  %v62 = vrot.slane %v36, 1
  %v63 = vsel %vm48, %v60, %v62
  %vm72 = vcmask 1045504
  %v73 = vrot.slane %v29, 2
  %v74 = vrot.slane %v30, 2
  %v75 = vsel %vm72, %v73, %v74
  %v76 = vrot.slane %v31, 2
  %v77 = vsel %vm72, %v74, %v76
  %v78 = vrot.slane %v32, 2
  %v79 = vsel %vm72, %v76, %v78
  %v80 = vrot.slane %v33, 2
  %v81 = vsel %vm72, %v78, %v80
  %v82 = vrot.slane %v34, 2
  %v83 = vsel %vm72, %v80, %v82
  %v84 = vrot.slane %v35, 2
  %v85 = vsel %vm72, %v82, %v84
  %v86 = vrot.slane %v36, 2
  %v87 = vsel %vm72, %v84, %v86
  %v97 = vrot.slane %v37, 1
  %v98 = vsel %vm48, %v62, %v97
  %v101 = vrot.slane %v37, 2
  %v102 = vsel %vm72, %v86, %v101
  %vm105 = vcmask 1044480
  %v106 = vrot.slane %v30, 3
  %v107 = vrot.slane %v31, 3
  %v108 = vsel %vm105, %v106, %v107
  %v109 = vrot.slane %v32, 3
  %v110 = vsel %vm105, %v107, %v109
  %v111 = vrot.slane %v33, 3
  %v112 = vsel %vm105, %v109, %v111
  %v113 = vrot.slane %v34, 3
  %v114 = vsel %vm105, %v111, %v113
  %v115 = vrot.slane %v35, 3
  %v116 = vsel %vm105, %v113, %v115
  %v117 = vrot.slane %v36, 3
  %v118 = vsel %vm105, %v115, %v117
  %v119 = vrot.slane %v37, 3
  %v120 = vsel %vm105, %v117, %v119
  %v130 = vrot.slane %v38, 2
  %v131 = vsel %vm72, %v101, %v130
  %v134 = vrot.slane %v38, 3
  %v135 = vsel %vm105, %v119, %v134
  %vm139 = vcmask 1043456
  %v140 = vrot.slane %v31, 4
  %v141 = vrot.slane %v32, 4
  %v142 = vsel %vm139, %v140, %v141
  %v143 = vrot.slane %v33, 4
  %v144 = vsel %vm139, %v141, %v143
  %v145 = vrot.slane %v34, 4
  %v146 = vsel %vm139, %v143, %v145
  %v147 = vrot.slane %v35, 4
  %v148 = vsel %vm139, %v145, %v147
  %v149 = vrot.slane %v36, 4
  %v150 = vsel %vm139, %v147, %v149
  %v151 = vrot.slane %v37, 4
  %v152 = vsel %vm139, %v149, %v151
  %v153 = vrot.slane %v38, 4
  %v154 = vsel %vm139, %v151, %v153
  %v155 = vrot.slane %v39, 4
  %v156 = vsel %vm139, %v153, %v155
  %v165 = vld [vmem:[%s1] sm:$0xff]
  %v166 = vld [vmem:[%s1 + $0x8] sm:$0xff]
  %v167 = vld [vmem:[%s1 + $0x10] sm:$0xff]
  %v168 = vld [vmem:[%s1 + $0x18] sm:$0xff]
  %v169 = vld [vmem:[%s1 + $0x20] sm:$0xff]
  %v170 = vld [vmem:[%s1 + $0x28] sm:$0xff]
  %v171 = vld [vmem:[%s1 + $0x30] sm:$0xff]
  %v172 = vld [vmem:[%s1 + $0x38] sm:$0xff]
  %v173 = vld [vmem:[%s1 + $0x40] sm:$0xff]
  %v174 = vld [vmem:[%s1 + $0x48] sm:$0xff]
  %v175 = vld [vmem:[%s1 + $0x50] sm:$0xff]
  %v176 = vld [vmem:[%s1 + $0x58] sm:$0xff]
  %v177 = vld [vmem:[%s1 + $0x60] sm:$0xff]
  %v178 = vld [vmem:[%s1 + $0x68] sm:$0xff]
  %v179 = vld [vmem:[%s1 + $0x70] sm:$0xff]
  %v180 = vld [vmem:[%s1 + $0x78] sm:$0xff]
  %v181 = vld [vmem:[%s1 + $0x80] sm:$0xff]
  %v182 = vld [vmem:[%s1 + $0x88] sm:$0xff]
  %v183 = vld [vmem:[%s1 + $0x90] sm:$0xff]
  %v184 = vld [vmem:[%s1 + $0x98] sm:$0xff]
  %v185 = vld [vmem:[%s1 + $0xa0] sm:$0xff]
  %v186 = vld [vmem:[%s1 + $0xa8] sm:$0xff]
  %v187 = vld [vmem:[%s1 + $0xb0] sm:$0xff]
  %v188 = vld [vmem:[%s1 + $0xb8] sm:$0xff]
  %v189 = vld [vmem:[%s1 + $0xc0] sm:$0xff]
  %v190 = vld [vmem:[%s1 + $0xc8] sm:$0xff]
  %v191 = vld [vmem:[%s1 + $0xd0] sm:$0xff]
  %v192 = vld [vmem:[%s1 + $0xd8] sm:$0xff]
  %v193 = vld [vmem:[%s1 + $0xe0] sm:$0xff]
  %v194 = vld [vmem:[%s1 + $0xe8] sm:$0xff]
  %v195 = vld [vmem:[%s1 + $0xf0] sm:$0xff]
  %v196 = vld [vmem:[%s1 + $0xf8] sm:$0xff]
  %v197 = vld [vmem:[%s1 + $0x100] sm:$0xff]
  %v198 = vld [vmem:[%s1 + $0x108] sm:$0xff]
  %v199 = vld [vmem:[%s1 + $0x110] sm:$0xff]
  %v200 = vld [vmem:[%s1 + $0x118] sm:$0xff]
  %v201 = vld [vmem:[%s1 + $0x120] sm:$0xff]
  %v202 = vld [vmem:[%s1 + $0x128] sm:$0xff]
  %v203 = vld [vmem:[%s1 + $0x130] sm:$0xff]
  %v204 = vld [vmem:[%s1 + $0x138] sm:$0xff]
  %v205 = vld [vmem:[%s1 + $0x140] sm:$0xff]
  %v206 = vld [vmem:[%s1 + $0x148] sm:$0xff]
  %v207 = vld [vmem:[%s1 + $0x150] sm:$0xff]
  %v208 = vld [vmem:[%s1 + $0x158] sm:$0xff]
  %v209 = vld [vmem:[%s1 + $0x160] sm:$0xff]
  %v210 = vld [vmem:[%s1 + $0x168] sm:$0xff]
  %v211 = vld [vmem:[%s1 + $0x170] sm:$0xff]
  %v212 = vld [vmem:[%s1 + $0x178] sm:$0xff]
  %v213 = vld [vmem:[%s1 + $0x180] sm:$0xff]
  %v214 = vld [vmem:[%s1 + $0x188] sm:$0xff]
  %v215 = vld [vmem:[%s1 + $0x190] sm:$0xff]
  %v216 = vld [vmem:[%s1 + $0x198] sm:$0xff]
  %v217 = vld [vmem:[%s1 + $0x1a0] sm:$0xff]
  %v218 = vld [vmem:[%s1 + $0x1a8] sm:$0xff]
  %v219 = vld [vmem:[%s1 + $0x1b0] sm:$0xff]
  %v220 = vld [vmem:[%s1 + $0x1b8] sm:$0xff]
  %v221 = vld [vmem:[%s1 + $0x1c0] sm:$0xff]
  %v222 = vld [vmem:[%s1 + $0x1c8] sm:$0xff]
  %v223 = vld [vmem:[%s1 + $0x1d0] sm:$0xff]
  %v224 = vld [vmem:[%s1 + $0x1d8] sm:$0xff]
  %v225 = vld [vmem:[%s1 + $0x1e0] sm:$0xff]
  %v226 = vld [vmem:[%s1 + $0x1e8] sm:$0xff]
  %v227 = vld [vmem:[%s1 + $0x1f0] sm:$0xff]
  %v228 = vld [vmem:[%s1 + $0x1f8] sm:$0xff]
  %v229 = vld [vmem:[%s1 + $0x200] sm:$0xff]
  %v230 = vld [vmem:[%s1 + $0x208] sm:$0xff]
  %v231 = vld [vmem:[%s1 + $0x210] sm:$0xff]
  %v232 = vld [vmem:[%s1 + $0x218] sm:$0xff]
  %v233 = vld [vmem:[%s1 + $0x220] sm:$0xff]
  %v234 = vld [vmem:[%s1 + $0x228] sm:$0xff]
  %v235 = vld [vmem:[%s1 + $0x230] sm:$0xff]
  %v236 = vld [vmem:[%s1 + $0x238] sm:$0xff]
  %v237 = vld [vmem:[%s1 + $0x240] sm:$0xff]
  %v238 = vld [vmem:[%s1 + $0x248] sm:$0xff]
  %v239 = vld [vmem:[%s1 + $0x250] sm:$0xff]
  %v240 = vld [vmem:[%s1 + $0x258] sm:$0xff]
  %v241 = vld [vmem:[%s1 + $0x260] sm:$0xff]
  %v242 = vld [vmem:[%s1 + $0x268] sm:$0xff]
  %v243 = vld [vmem:[%s1 + $0x270] sm:$0xff]
  %v244 = vld [vmem:[%s1 + $0x278] sm:$0xff]
  %v245 = vld [vmem:[%s1 + $0x280] sm:$0xff]
  %v246 = vld [vmem:[%s1 + $0x288] sm:$0xff]
  %v247 = vld [vmem:[%s1 + $0x290] sm:$0xff]
  %v248 = vld [vmem:[%s1 + $0x298] sm:$0xff]
  %v249 = vld [vmem:[%s1 + $0x2a0] sm:$0xff]
  %v250 = vld [vmem:[%s1 + $0x2a8] sm:$0xff]
  %v251 = vld [vmem:[%s1 + $0x2b0] sm:$0xff]
  %v252 = vld [vmem:[%s1 + $0x2b8] sm:$0xff]
  %v253 = vld [vmem:[%s1 + $0x2c0] sm:$0xff]
  %v254 = vld [vmem:[%s1 + $0x2c8] sm:$0xff]
  %v255 = vld [vmem:[%s1 + $0x2d0] sm:$0xff]
  %v256 = vld [vmem:[%s1 + $0x2d8] sm:$0xff]
  %v257 = vld [vmem:[%s1 + $0x2e0] sm:$0xff]
  %v258 = vld [vmem:[%s1 + $0x2e8] sm:$0xff]
  %v259 = vld [vmem:[%s1 + $0x2f0] sm:$0xff]
  %v260 = vld [vmem:[%s1 + $0x2f8] sm:$0xff]
  %v261 = vld [vmem:[%s1 + $0x300] sm:$0xff]
  %v262 = vld [vmem:[%s1 + $0x308] sm:$0xff]
  %v263 = vld [vmem:[%s1 + $0x310] sm:$0xff]
  %v264 = vld [vmem:[%s1 + $0x318] sm:$0xff]
  %v265 = vld [vmem:[%s1 + $0x320] sm:$0xff]
  %v266 = vld [vmem:[%s1 + $0x328] sm:$0xff]
  %v267 = vld [vmem:[%s1 + $0x330] sm:$0xff]
  %v268 = vld [vmem:[%s1 + $0x338] sm:$0xff]
  %v269 = vld [vmem:[%s1 + $0x340] sm:$0xff]
  %v270 = vld [vmem:[%s1 + $0x348] sm:$0xff]
  %v271 = vld [vmem:[%s1 + $0x350] sm:$0xff]
  %v272 = vld [vmem:[%s1 + $0x358] sm:$0xff]
  %v273 = vld [vmem:[%s1 + $0x360] sm:$0xff]
  %v274 = vld [vmem:[%s1 + $0x368] sm:$0xff]
  %v275 = vld [vmem:[%s1 + $0x370] sm:$0xff]
  %v276 = vld [vmem:[%s1 + $0x378] sm:$0xff]
  %v277 = vld [vmem:[%s1 + $0x380] sm:$0xff]
  %v278 = vld [vmem:[%s1 + $0x388] sm:$0xff]
  %v279 = vld [vmem:[%s1 + $0x390] sm:$0xff]
  %v280 = vld [vmem:[%s1 + $0x398] sm:$0xff]
  %v281 = vld [vmem:[%s1 + $0x3a0] sm:$0xff]
  %v282 = vld [vmem:[%s1 + $0x3a8] sm:$0xff]
  %v283 = vld [vmem:[%s1 + $0x3b0] sm:$0xff]
  %v284 = vld [vmem:[%s1 + $0x3b8] sm:$0xff]
  %v285 = vld [vmem:[%s1 + $0x3c0] sm:$0xff]
  %v286 = vld [vmem:[%s1 + $0x3c8] sm:$0xff]
  %v287 = vld [vmem:[%s1 + $0x3d0] sm:$0xff]
  %v288 = vld [vmem:[%s1 + $0x3d8] sm:$0xff]
  %v289 = vld [vmem:[%s1 + $0x3e0] sm:$0xff]
  %v290 = vld [vmem:[%s1 + $0x3e8] sm:$0xff]
  %v291 = vld [vmem:[%s1 + $0x3f0] sm:$0xff]
  %v292 = vld [vmem:[%s1 + $0x3f8] sm:$0xff]
  %v293 = vld [vmem:[%s1 + $0x400] sm:$0xff]
  %v294 = vld [vmem:[%s1 + $0x408] sm:$0xff]
  %v295 = vld [vmem:[%s1 + $0x410] sm:$0xff]
  %v296 = vld [vmem:[%s1 + $0x418] sm:$0xff]
  %v297 = vld [vmem:[%s1 + $0x420] sm:$0xff]
  %v298 = vld [vmem:[%s1 + $0x428] sm:$0xff]
  %v299 = vld [vmem:[%s1 + $0x430] sm:$0xff]
  %v300 = vld [vmem:[%s1 + $0x438] sm:$0xff]
  %v301 = vld [vmem:[%s1 + $0x440] sm:$0xff]
  %v302 = vld [vmem:[%s1 + $0x448] sm:$0xff]
  %v303 = vld [vmem:[%s1 + $0x450] sm:$0xff]
  %v304 = vld [vmem:[%s1 + $0x458] sm:$0xff]
  %v305 = vld [vmem:[%s1 + $0x460] sm:$0xff]
  %v306 = vld [vmem:[%s1 + $0x468] sm:$0xff]
  %v307 = vld [vmem:[%s1 + $0x470] sm:$0xff]
  %v308 = vld [vmem:[%s1 + $0x478] sm:$0xff]
  %309 = vmatprep.subr.mxu0 0.0
  %310 = vmatpush1.msra.mxu0 %v165
  %311 = vmatprep.subr.mxu0 0.0
  %312 = vmatpush1.msra.mxu0 %v166
  %313 = vmatprep.subr.mxu0 0.0
  %314 = vmatpush1.msra.mxu0 %v167
  %315 = vmatprep.subr.mxu0 0.0
  %316 = vmatpush1.msra.mxu0 %v168
  %317 = vmatprep.subr.mxu0 0.0
  %318 = vmatpush1.msra.mxu0 %v169
  %319 = vmatprep.subr.mxu0 0.0
  %320 = vmatpush1.msra.mxu0 %v170
  %321 = vmatprep.subr.mxu0 0.0
  %322 = vmatpush1.msra.mxu0 %v171
  %323 = vmatprep.subr.mxu0 0.0
  %324 = vmatpush1.msra.mxu0 %v172
  %325 = vmatprep.subr.mxu0 0.0
  %326 = vmatpush1.msra.mxu0 %v173
  %327 = vmatprep.subr.mxu0 0.0
  %328 = vmatpush1.msra.mxu0 %v174
  %329 = vmatprep.subr.mxu0 0.0
  %330 = vmatpush1.msra.mxu0 %v175
  %331 = vmatprep.subr.mxu0 0.0
  %332 = vmatpush1.msra.mxu0 %v176
  %333 = vmatprep.subr.mxu0 0.0
  %334 = vmatpush1.msra.mxu0 %v177
  %335 = vmatprep.subr.mxu0 0.0
  %336 = vmatpush1.msra.mxu0 %v178
  %337 = vmatprep.subr.mxu0 0.0
  %338 = vmatpush1.msra.mxu0 %v179
  %339 = vmatprep.subr.mxu0 0.0
  %340 = vmatpush1.msra.mxu0 %v180
  %341 = vmatprep.subr.mxu0 0.0
  %342 = vmatpush1.msra.mxu0 %v181
  %343 = vmatprep.subr.mxu0 0.0
  %344 = vmatpush1.msra.mxu0 %v182
  %345 = vmatprep.subr.mxu0 0.0
  %346 = vmatpush1.msra.mxu0 %v183
  %347 = vmatprep.subr.mxu0 0.0
  %348 = vmatpush1.msra.mxu0 %v184
  %349 = vmatprep.subr.mxu0 0.0
  %350 = vmatpush1.msra.mxu0 %v185
  %351 = vmatprep.subr.mxu0 0.0
  %352 = vmatpush1.msra.mxu0 %v186
  %353 = vmatprep.subr.mxu0 0.0
  %354 = vmatpush1.msra.mxu0 %v187
  %355 = vmatprep.subr.mxu0 0.0
  %356 = vmatpush1.msra.mxu0 %v188
  %357 = vmatprep.subr.mxu0 0.0
  %358 = vmatpush1.msra.mxu0 %v189
  %359 = vmatprep.subr.mxu0 0.0
  %360 = vmatpush1.msra.mxu0 %v190
  %361 = vmatprep.subr.mxu0 0.0
  %362 = vmatpush1.msra.mxu0 %v191
  %363 = vmatprep.subr.mxu0 0.0
  %364 = vmatpush1.msra.mxu0 %v192
  %365 = vmatprep.subr.mxu0 0.0
  %366 = vmatpush1.msra.mxu0 %v193
  %367 = vmatprep.subr.mxu0 0.0
  %368 = vmatpush1.msra.mxu0 %v194
  %369 = vmatprep.subr.mxu0 0.0
  %370 = vmatpush1.msra.mxu0 %v195
  %371 = vmatprep.subr.mxu0 0.0
  %372 = vmatpush1.msra.mxu0 %v196
  %373 = vmatprep.mubr.f32.mxu0 %v51
  %374 = vmatmul.mubr.f32.gmra.mrb[0].mxu0 %v29
  %v375 = vpop.f32.mrb[0].mxu0
  %v376 = vadd.f32 0.0, %v375
  %v377 = vpop.f32.mrb[0].mxu0
  %378 = vmatprep.mubr.f32.mxu0 %v53
  %379 = vmatmul.mubr.f32.gmra.mrb[0].mxu0 %v30
  %v380 = vpop.f32.mrb[0].mxu0
  %v381 = vadd.f32 0.0, %v380
  %v382 = vpop.f32.mrb[0].mxu0
  %383 = vmatprep.mubr.f32.mxu0 %v55
  %384 = vmatmul.mubr.f32.gmra.mrb[0].mxu0 %v31
  %v385 = vpop.f32.mrb[0].mxu0
  %v386 = vadd.f32 0.0, %v385
  %v387 = vpop.f32.mrb[0].mxu0
  %388 = vmatprep.mubr.f32.mxu0 %v57
  %389 = vmatmul.mubr.f32.gmra.mrb[0].mxu0 %v32
  %v390 = vpop.f32.mrb[0].mxu0
  %v391 = vadd.f32 0.0, %v390
  %v392 = vpop.f32.mrb[0].mxu0
  %393 = vmatprep.mubr.f32.mxu0 %v59
  %394 = vmatmul.mubr.f32.gmra.mrb[0].mxu0 %v33
  %v395 = vpop.f32.mrb[0].mxu0
  %v396 = vadd.f32 0.0, %v395
  %v397 = vpop.f32.mrb[0].mxu0
  %398 = vmatprep.mubr.f32.mxu0 %v61
  %399 = vmatmul.mubr.f32.gmra.mrb[0].mxu0 %v34
  %v400 = vpop.f32.mrb[0].mxu0
  %v401 = vadd.f32 0.0, %v400
  %v402 = vpop.f32.mrb[0].mxu0
  %403 = vmatprep.mubr.f32.mxu0 %v63
  %404 = vmatmul.mubr.f32.gmra.mrb[0].mxu0 %v35
  %v405 = vpop.f32.mrb[0].mxu0
  %v406 = vadd.f32 0.0, %v405
  %v407 = vpop.f32.mrb[0].mxu0
  %408 = vmatprep.mubr.f32.mxu0 %v62
  %409 = vmatmul.mubr.f32.gmra.mrb[0].mxu0 %v36
  %v410 = vpop.f32.mrb[0].mxu0
  %v411 = vadd.f32 0.0, %v410
  %v412 = vpop.f32.mrb[0].mxu0
  %413 = vdwg.mxu0
  %414 = vmatprep.subr.mxu0 0.0
  %415 = vmatpush1.msra.mxu0 %v197
  %416 = vmatprep.subr.mxu0 0.0
  %417 = vmatpush1.msra.mxu0 %v198
  %418 = vmatprep.subr.mxu0 0.0
  %419 = vmatpush1.msra.mxu0 %v199
  %420 = vmatprep.subr.mxu0 0.0
  %421 = vmatpush1.msra.mxu0 %v200
  %422 = vmatprep.subr.mxu0 0.0
  %423 = vmatpush1.msra.mxu0 %v201
  %424 = vmatprep.subr.mxu0 0.0
  %425 = vmatpush1.msra.mxu0 %v202
  %426 = vmatprep.subr.mxu0 0.0
  %427 = vmatpush1.msra.mxu0 %v203
  %428 = vmatprep.subr.mxu0 0.0
  %429 = vmatpush1.msra.mxu0 %v204
  %430 = vmatprep.subr.mxu0 0.0
  %431 = vmatpush1.msra.mxu0 %v205
  %432 = vmatprep.subr.mxu0 0.0
  %433 = vmatpush1.msra.mxu0 %v206
  %434 = vmatprep.subr.mxu0 0.0
  %435 = vmatpush1.msra.mxu0 %v207
  %436 = vmatprep.subr.mxu0 0.0
  %437 = vmatpush1.msra.mxu0 %v208
  %438 = vmatprep.subr.mxu0 0.0
  %439 = vmatpush1.msra.mxu0 %v209
  %440 = vmatprep.subr.mxu0 0.0
  %441 = vmatpush1.msra.mxu0 %v210
  %442 = vmatprep.subr.mxu0 0.0
  %443 = vmatpush1.msra.mxu0 %v211
  %444 = vmatprep.subr.mxu0 0.0
  %445 = vmatpush1.msra.mxu0 %v212
  %446 = vmatprep.subr.mxu0 0.0
  %447 = vmatpush1.msra.mxu0 %v213
  %448 = vmatprep.subr.mxu0 0.0
  %449 = vmatpush1.msra.mxu0 %v214
  %450 = vmatprep.subr.mxu0 0.0
  %451 = vmatpush1.msra.mxu0 %v215
  %452 = vmatprep.subr.mxu0 0.0
  %453 = vmatpush1.msra.mxu0 %v216
  %454 = vmatprep.subr.mxu0 0.0
  %455 = vmatpush1.msra.mxu0 %v217
  %456 = vmatprep.subr.mxu0 0.0
  %457 = vmatpush1.msra.mxu0 %v218
  %458 = vmatprep.subr.mxu0 0.0
  %459 = vmatpush1.msra.mxu0 %v219
  %460 = vmatprep.subr.mxu0 0.0
  %461 = vmatpush1.msra.mxu0 %v220
  %462 = vmatprep.subr.mxu0 0.0
  %463 = vmatpush1.msra.mxu0 %v221
  %464 = vmatprep.subr.mxu0 0.0
  %465 = vmatpush1.msra.mxu0 %v222
  %466 = vmatprep.subr.mxu0 0.0
  %467 = vmatpush1.msra.mxu0 %v223
  %468 = vmatprep.subr.mxu0 0.0
  %469 = vmatpush1.msra.mxu0 %v224
  %470 = vmatprep.subr.mxu0 0.0
  %471 = vmatpush1.msra.mxu0 %v225
  %472 = vmatprep.subr.mxu0 0.0
  %473 = vmatpush1.msra.mxu0 %v226
  %474 = vmatprep.subr.mxu0 0.0
  %475 = vmatpush1.msra.mxu0 %v227
  %476 = vmatprep.subr.mxu0 0.0
  %477 = vmatpush1.msra.mxu0 %v228
  %478 = vmatprep.mubr.f32.mxu0 %v53
  %479 = vmatmul.mubr.f32.gmra.mrb[0].mxu0 %v75
  %v480 = vpop.f32.mrb[0].mxu0
  %v481 = vadd.f32 %v376, %v480
  %v482 = vpop.f32.mrb[0].mxu0
  %483 = vmatprep.mubr.f32.mxu0 %v55
  %484 = vmatmul.mubr.f32.gmra.mrb[0].mxu0 %v77
  %v485 = vpop.f32.mrb[0].mxu0
  %v486 = vadd.f32 %v381, %v485
  %v487 = vpop.f32.mrb[0].mxu0
  %488 = vmatprep.mubr.f32.mxu0 %v57
  %489 = vmatmul.mubr.f32.gmra.mrb[0].mxu0 %v79
  %v490 = vpop.f32.mrb[0].mxu0
  %v491 = vadd.f32 %v386, %v490
  %v492 = vpop.f32.mrb[0].mxu0
  %493 = vmatprep.mubr.f32.mxu0 %v59
  %494 = vmatmul.mubr.f32.gmra.mrb[0].mxu0 %v81
  %v495 = vpop.f32.mrb[0].mxu0
  %v496 = vadd.f32 %v391, %v495
  %v497 = vpop.f32.mrb[0].mxu0
  %498 = vmatprep.mubr.f32.mxu0 %v61
  %499 = vmatmul.mubr.f32.gmra.mrb[0].mxu0 %v83
  %v500 = vpop.f32.mrb[0].mxu0
  %v501 = vadd.f32 %v396, %v500
  %v502 = vpop.f32.mrb[0].mxu0
  %503 = vmatprep.mubr.f32.mxu0 %v63
  %504 = vmatmul.mubr.f32.gmra.mrb[0].mxu0 %v85
  %v505 = vpop.f32.mrb[0].mxu0
  %v506 = vadd.f32 %v401, %v505
  %v507 = vpop.f32.mrb[0].mxu0
  %508 = vmatprep.mubr.f32.mxu0 %v98
  %509 = vmatmul.mubr.f32.gmra.mrb[0].mxu0 %v87
  %v510 = vpop.f32.mrb[0].mxu0
  %v511 = vadd.f32 %v406, %v510
  %v512 = vpop.f32.mrb[0].mxu0
  %513 = vmatprep.mubr.f32.mxu0 %v97
  %514 = vmatmul.mubr.f32.gmra.mrb[0].mxu0 %v86
  %v515 = vpop.f32.mrb[0].mxu0
  %v516 = vadd.f32 %v411, %v515
  %v517 = vpop.f32.mrb[0].mxu0
  %518 = vdwg.mxu0
  %519 = vmatprep.subr.mxu0 0.0
  %520 = vmatpush1.msra.mxu0 %v229
  %521 = vmatprep.subr.mxu0 0.0
  %522 = vmatpush1.msra.mxu0 %v230
  %523 = vmatprep.subr.mxu0 0.0
  %524 = vmatpush1.msra.mxu0 %v231
  %525 = vmatprep.subr.mxu0 0.0
  %526 = vmatpush1.msra.mxu0 %v232
  %527 = vmatprep.subr.mxu0 0.0
  %528 = vmatpush1.msra.mxu0 %v233
  %529 = vmatprep.subr.mxu0 0.0
  %530 = vmatpush1.msra.mxu0 %v234
  %531 = vmatprep.subr.mxu0 0.0
  %532 = vmatpush1.msra.mxu0 %v235
  %533 = vmatprep.subr.mxu0 0.0
  %534 = vmatpush1.msra.mxu0 %v236
  %535 = vmatprep.subr.mxu0 0.0
  %536 = vmatpush1.msra.mxu0 %v237
  %537 = vmatprep.subr.mxu0 0.0
  %538 = vmatpush1.msra.mxu0 %v238
  %539 = vmatprep.subr.mxu0 0.0
  %540 = vmatpush1.msra.mxu0 %v239
  %541 = vmatprep.subr.mxu0 0.0
  %542 = vmatpush1.msra.mxu0 %v240
  %543 = vmatprep.subr.mxu0 0.0
  %544 = vmatpush1.msra.mxu0 %v241
  %545 = vmatprep.subr.mxu0 0.0
  %546 = vmatpush1.msra.mxu0 %v242
  %547 = vmatprep.subr.mxu0 0.0
  %548 = vmatpush1.msra.mxu0 %v243
  %549 = vmatprep.subr.mxu0 0.0
  %550 = vmatpush1.msra.mxu0 %v244
  %551 = vmatprep.subr.mxu0 0.0
  %552 = vmatpush1.msra.mxu0 %v245
  %553 = vmatprep.subr.mxu0 0.0
  %554 = vmatpush1.msra.mxu0 %v246
  %555 = vmatprep.subr.mxu0 0.0
  %556 = vmatpush1.msra.mxu0 %v247
  %557 = vmatprep.subr.mxu0 0.0
  %558 = vmatpush1.msra.mxu0 %v248
  %559 = vmatprep.subr.mxu0 0.0
  %560 = vmatpush1.msra.mxu0 %v249
  %561 = vmatprep.subr.mxu0 0.0
  %562 = vmatpush1.msra.mxu0 %v250
  %563 = vmatprep.subr.mxu0 0.0
  %564 = vmatpush1.msra.mxu0 %v251
  %565 = vmatprep.subr.mxu0 0.0
  %566 = vmatpush1.msra.mxu0 %v252
  %567 = vmatprep.subr.mxu0 0.0
  %568 = vmatpush1.msra.mxu0 %v253
  %569 = vmatprep.subr.mxu0 0.0
  %570 = vmatpush1.msra.mxu0 %v254
  %571 = vmatprep.subr.mxu0 0.0
  %572 = vmatpush1.msra.mxu0 %v255
  %573 = vmatprep.subr.mxu0 0.0
  %574 = vmatpush1.msra.mxu0 %v256
  %575 = vmatprep.subr.mxu0 0.0
  %576 = vmatpush1.msra.mxu0 %v257
  %577 = vmatprep.subr.mxu0 0.0
  %578 = vmatpush1.msra.mxu0 %v258
  %579 = vmatprep.subr.mxu0 0.0
  %580 = vmatpush1.msra.mxu0 %v259
  %581 = vmatprep.subr.mxu0 0.0
  %582 = vmatpush1.msra.mxu0 %v260
  %583 = vmatprep.mubr.f32.mxu0 %v108
  %584 = vmatmul.mubr.f32.gmra.mrb[0].mxu0 %v77
  %v585 = vpop.f32.mrb[0].mxu0
  %v586 = vadd.f32 %v481, %v585
  %v587 = vpop.f32.mrb[0].mxu0
  %588 = vmatprep.mubr.f32.mxu0 %v110
  %589 = vmatmul.mubr.f32.gmra.mrb[0].mxu0 %v79
  %v590 = vpop.f32.mrb[0].mxu0
  %v591 = vadd.f32 %v486, %v590
  %v592 = vpop.f32.mrb[0].mxu0
  %593 = vmatprep.mubr.f32.mxu0 %v112
  %594 = vmatmul.mubr.f32.gmra.mrb[0].mxu0 %v81
  %v595 = vpop.f32.mrb[0].mxu0
  %v596 = vadd.f32 %v491, %v595
  %v597 = vpop.f32.mrb[0].mxu0
  %598 = vmatprep.mubr.f32.mxu0 %v114
  %599 = vmatmul.mubr.f32.gmra.mrb[0].mxu0 %v83
  %v600 = vpop.f32.mrb[0].mxu0
  %v601 = vadd.f32 %v496, %v600
  %v602 = vpop.f32.mrb[0].mxu0
  %603 = vmatprep.mubr.f32.mxu0 %v116
  %604 = vmatmul.mubr.f32.gmra.mrb[0].mxu0 %v85
  %v605 = vpop.f32.mrb[0].mxu0
  %v606 = vadd.f32 %v501, %v605
  %v607 = vpop.f32.mrb[0].mxu0
  %608 = vmatprep.mubr.f32.mxu0 %v118
  %609 = vmatmul.mubr.f32.gmra.mrb[0].mxu0 %v87
  %v610 = vpop.f32.mrb[0].mxu0
  %v611 = vadd.f32 %v506, %v610
  %v612 = vpop.f32.mrb[0].mxu0
  %613 = vmatprep.mubr.f32.mxu0 %v120
  %614 = vmatmul.mubr.f32.gmra.mrb[0].mxu0 %v102
  %v615 = vpop.f32.mrb[0].mxu0
  %v616 = vadd.f32 %v511, %v615
  %v617 = vpop.f32.mrb[0].mxu0
  %618 = vmatprep.mubr.f32.mxu0 %v119
  %619 = vmatmul.mubr.f32.gmra.mrb[0].mxu0 %v101
  %v620 = vpop.f32.mrb[0].mxu0
  %v621 = vadd.f32 %v516, %v620
  %v622 = vpop.f32.mrb[0].mxu0
  %623 = vdwg.mxu0
  %624 = vmatprep.subr.mxu0 0.0
  %625 = vmatpush1.msra.mxu0 %v261
  %626 = vmatprep.subr.mxu0 0.0
  %627 = vmatpush1.msra.mxu0 %v262
  %628 = vmatprep.subr.mxu0 0.0
  %629 = vmatpush1.msra.mxu0 %v263
  %630 = vmatprep.subr.mxu0 0.0
  %631 = vmatpush1.msra.mxu0 %v264
  %632 = vmatprep.subr.mxu0 0.0
  %633 = vmatpush1.msra.mxu0 %v265
  %634 = vmatprep.subr.mxu0 0.0
  %635 = vmatpush1.msra.mxu0 %v266
  %636 = vmatprep.subr.mxu0 0.0
  %637 = vmatpush1.msra.mxu0 %v267
  %638 = vmatprep.subr.mxu0 0.0
  %639 = vmatpush1.msra.mxu0 %v268
  %640 = vmatprep.subr.mxu0 0.0
  %641 = vmatpush1.msra.mxu0 %v269
  %642 = vmatprep.subr.mxu0 0.0
  %643 = vmatpush1.msra.mxu0 %v270
  %644 = vmatprep.subr.mxu0 0.0
  %645 = vmatpush1.msra.mxu0 %v271
  %646 = vmatprep.subr.mxu0 0.0
  %647 = vmatpush1.msra.mxu0 %v272
  %648 = vmatprep.subr.mxu0 0.0
  %649 = vmatpush1.msra.mxu0 %v273
  %650 = vmatprep.subr.mxu0 0.0
  %651 = vmatpush1.msra.mxu0 %v274
  %652 = vmatprep.subr.mxu0 0.0
  %653 = vmatpush1.msra.mxu0 %v275
  %654 = vmatprep.subr.mxu0 0.0
  %655 = vmatpush1.msra.mxu0 %v276
  %656 = vmatprep.subr.mxu0 0.0
  %657 = vmatpush1.msra.mxu0 %v277
  %658 = vmatprep.subr.mxu0 0.0
  %659 = vmatpush1.msra.mxu0 %v278
  %660 = vmatprep.subr.mxu0 0.0
  %661 = vmatpush1.msra.mxu0 %v279
  %662 = vmatprep.subr.mxu0 0.0
  %663 = vmatpush1.msra.mxu0 %v280
  %664 = vmatprep.subr.mxu0 0.0
  %665 = vmatpush1.msra.mxu0 %v281
  %666 = vmatprep.subr.mxu0 0.0
  %667 = vmatpush1.msra.mxu0 %v282
  %668 = vmatprep.subr.mxu0 0.0
  %669 = vmatpush1.msra.mxu0 %v283
  %670 = vmatprep.subr.mxu0 0.0
  %671 = vmatpush1.msra.mxu0 %v284
  %672 = vmatprep.subr.mxu0 0.0
  %673 = vmatpush1.msra.mxu0 %v285
  %674 = vmatprep.subr.mxu0 0.0
  %675 = vmatpush1.msra.mxu0 %v286
  %676 = vmatprep.subr.mxu0 0.0
  %677 = vmatpush1.msra.mxu0 %v287
  %678 = vmatprep.subr.mxu0 0.0
  %679 = vmatpush1.msra.mxu0 %v288
  %680 = vmatprep.subr.mxu0 0.0
  %681 = vmatpush1.msra.mxu0 %v289
  %682 = vmatprep.subr.mxu0 0.0
  %683 = vmatpush1.msra.mxu0 %v290
  %684 = vmatprep.subr.mxu0 0.0
  %685 = vmatpush1.msra.mxu0 %v291
  %686 = vmatprep.subr.mxu0 0.0
  %687 = vmatpush1.msra.mxu0 %v292
  %688 = vmatprep.mubr.f32.mxu0 %v110
  %689 = vmatmul.mubr.f32.gmra.mrb[0].mxu0 %v79
  %v690 = vpop.f32.mrb[0].mxu0
  %v691 = vadd.f32 %v586, %v690
  %v692 = vpop.f32.mrb[0].mxu0
  %693 = vmatprep.mubr.f32.mxu0 %v112
  %694 = vmatmul.mubr.f32.gmra.mrb[0].mxu0 %v81
  %v695 = vpop.f32.mrb[0].mxu0
  %v696 = vadd.f32 %v591, %v695
  %v697 = vpop.f32.mrb[0].mxu0
  %698 = vmatprep.mubr.f32.mxu0 %v114
  %699 = vmatmul.mubr.f32.gmra.mrb[0].mxu0 %v83
  %v700 = vpop.f32.mrb[0].mxu0
  %v701 = vadd.f32 %v596, %v700
  %v702 = vpop.f32.mrb[0].mxu0
  %703 = vmatprep.mubr.f32.mxu0 %v116
  %704 = vmatmul.mubr.f32.gmra.mrb[0].mxu0 %v85
  %v705 = vpop.f32.mrb[0].mxu0
  %v706 = vadd.f32 %v601, %v705
  %v707 = vpop.f32.mrb[0].mxu0
  %708 = vmatprep.mubr.f32.mxu0 %v118
  %709 = vmatmul.mubr.f32.gmra.mrb[0].mxu0 %v87
  %v710 = vpop.f32.mrb[0].mxu0
  %v711 = vadd.f32 %v606, %v710
  %v712 = vpop.f32.mrb[0].mxu0
  %713 = vmatprep.mubr.f32.mxu0 %v120
  %714 = vmatmul.mubr.f32.gmra.mrb[0].mxu0 %v102
  %v715 = vpop.f32.mrb[0].mxu0
  %v716 = vadd.f32 %v611, %v715
  %v717 = vpop.f32.mrb[0].mxu0
  %718 = vmatprep.mubr.f32.mxu0 %v135
  %719 = vmatmul.mubr.f32.gmra.mrb[0].mxu0 %v131
  %v720 = vpop.f32.mrb[0].mxu0
  %v721 = vadd.f32 %v616, %v720
  %v722 = vpop.f32.mrb[0].mxu0
  %723 = vmatprep.mubr.f32.mxu0 %v134
  %724 = vmatmul.mubr.f32.gmra.mrb[0].mxu0 %v130
  %v725 = vpop.f32.mrb[0].mxu0
  %v726 = vadd.f32 %v621, %v725
  %v727 = vpop.f32.mrb[0].mxu0
  %728 = vdwg.mxu0
  %729 = vmatprep.subr.mxu0 0.0
  %730 = vmatpush1.msra.mxu0 %v293
  %731 = vmatprep.subr.mxu0 0.0
  %732 = vmatpush1.msra.mxu0 %v294
  %733 = vmatprep.subr.mxu0 0.0
  %734 = vmatpush1.msra.mxu0 %v295
  %735 = vmatprep.subr.mxu0 0.0
  %736 = vmatpush1.msra.mxu0 %v296
  %737 = vmatprep.subr.mxu0 0.0
  %738 = vmatpush1.msra.mxu0 %v297
  %739 = vmatprep.subr.mxu0 0.0
  %740 = vmatpush1.msra.mxu0 %v298
  %741 = vmatprep.subr.mxu0 0.0
  %742 = vmatpush1.msra.mxu0 %v299
  %743 = vmatprep.subr.mxu0 0.0
  %744 = vmatpush1.msra.mxu0 %v300
  %745 = vmatprep.subr.mxu0 0.0
  %746 = vmatpush1.msra.mxu0 %v301
  %747 = vmatprep.subr.mxu0 0.0
  %748 = vmatpush1.msra.mxu0 %v302
  %749 = vmatprep.subr.mxu0 0.0
  %750 = vmatpush1.msra.mxu0 %v303
  %751 = vmatprep.subr.mxu0 0.0
  %752 = vmatpush1.msra.mxu0 %v304
  %753 = vmatprep.subr.mxu0 0.0
  %754 = vmatpush1.msra.mxu0 %v305
  %755 = vmatprep.subr.mxu0 0.0
  %756 = vmatpush1.msra.mxu0 %v306
  %757 = vmatprep.subr.mxu0 0.0
  %758 = vmatpush1.msra.mxu0 %v307
  %759 = vmatprep.subr.mxu0 0.0
  %760 = vmatpush1.msra.mxu0 %v308
  %761 = vmatprep.subr.mxu0 0.0
  %762 = vmatpush1.msra.mxu0 0.0
  %763 = vmatprep.subr.mxu0 0.0
  %764 = vmatpush1.msra.mxu0 0.0
  %765 = vmatprep.subr.mxu0 0.0
  %766 = vmatpush1.msra.mxu0 0.0
  %767 = vmatprep.subr.mxu0 0.0
  %768 = vmatpush1.msra.mxu0 0.0
  %769 = vmatprep.subr.mxu0 0.0
  %770 = vmatpush1.msra.mxu0 0.0
  %771 = vmatprep.subr.mxu0 0.0
  %772 = vmatpush1.msra.mxu0 0.0
  %773 = vmatprep.subr.mxu0 0.0
  %774 = vmatpush1.msra.mxu0 0.0
  %775 = vmatprep.subr.mxu0 0.0
  %776 = vmatpush1.msra.mxu0 0.0
  %777 = vmatprep.subr.mxu0 0.0
  %778 = vmatpush1.msra.mxu0 0.0
  %779 = vmatprep.subr.mxu0 0.0
  %780 = vmatpush1.msra.mxu0 0.0
  %781 = vmatprep.subr.mxu0 0.0
  %782 = vmatpush1.msra.mxu0 0.0
  %783 = vmatprep.subr.mxu0 0.0
  %784 = vmatpush1.msra.mxu0 0.0
  %785 = vmatprep.subr.mxu0 0.0
  %786 = vmatpush1.msra.mxu0 0.0
  %787 = vmatprep.subr.mxu0 0.0
  %788 = vmatpush1.msra.mxu0 0.0
  %789 = vmatprep.subr.mxu0 0.0
  %790 = vmatpush1.msra.mxu0 0.0
  %791 = vmatprep.subr.mxu0 0.0
  %792 = vmatpush1.msra.mxu0 0.0
  %793 = vmatprep.mubr.f32.mxu0 0.0
  %794 = vmatmul.mubr.f32.gmra.mrb[0].mxu0 %v142
  %v795 = vpop.f32.mrb[0].mxu0
  %v796 = vadd.f32 %v691, %v795
  %v797 = vpop.f32.mrb[0].mxu0
  %798 = vmatprep.mubr.f32.mxu0 0.0
  %799 = vmatmul.mubr.f32.gmra.mrb[0].mxu0 %v144
  %v800 = vpop.f32.mrb[0].mxu0
  %v801 = vadd.f32 %v696, %v800
  %v802 = vpop.f32.mrb[0].mxu0
  %803 = vmatprep.mubr.f32.mxu0 0.0
  %804 = vmatmul.mubr.f32.gmra.mrb[0].mxu0 %v146
  %v805 = vpop.f32.mrb[0].mxu0
  %v806 = vadd.f32 %v701, %v805
  %v807 = vpop.f32.mrb[0].mxu0
  %808 = vmatprep.mubr.f32.mxu0 0.0
  %809 = vmatmul.mubr.f32.gmra.mrb[0].mxu0 %v148
  %v810 = vpop.f32.mrb[0].mxu0
  %v811 = vadd.f32 %v706, %v810
  %v812 = vpop.f32.mrb[0].mxu0
  %813 = vmatprep.mubr.f32.mxu0 0.0
  %814 = vmatmul.mubr.f32.gmra.mrb[0].mxu0 %v150
  %v815 = vpop.f32.mrb[0].mxu0
  %v816 = vadd.f32 %v711, %v815
  %v817 = vpop.f32.mrb[0].mxu0
  %818 = vmatprep.mubr.f32.mxu0 0.0
  %819 = vmatmul.mubr.f32.gmra.mrb[0].mxu0 %v152
  %v820 = vpop.f32.mrb[0].mxu0
  %v821 = vadd.f32 %v716, %v820
  %v822 = vpop.f32.mrb[0].mxu0
  %823 = vmatprep.mubr.f32.mxu0 0.0
  %824 = vmatmul.mubr.f32.gmra.mrb[0].mxu0 %v154
  %v825 = vpop.f32.mrb[0].mxu0
  %v826 = vadd.f32 %v721, %v825
  %v827 = vpop.f32.mrb[0].mxu0
  %828 = vmatprep.mubr.f32.mxu0 0.0
  %829 = vmatmul.mubr.f32.gmra.mrb[0].mxu0 %v156
  %v830 = vpop.f32.mrb[0].mxu0
  %v831 = vadd.f32 %v726, %v830
  %v832 = vpop.f32.mrb[0].mxu0
  %833 = vdwg.mxu0
  %vm834 = vcmask 260096
  %835 = vst.msk [vmem:[#allocation2] sm:$0x7f] %vm834, %v796
  %vm836 = vcmask 261121
  %837 = vst.msk [vmem:[#allocation2 + $0x6] sm:$0xfe] %vm836, %v801
  %vm838 = vcmask 261122
  %839 = vst.msk [vmem:[#allocation2 + $0xc] sm:$0xfc] %vm838, %v806
  %vm840 = vcmask 253952
  %841 = vst.msk [vmem:[#allocation2 + $0x14] sm:$0x1] %vm840, %v811
  %vm842 = vcmask 261123
  %843 = vst.msk [vmem:[#allocation2 + $0x12] sm:$0xf8] %vm842, %v811
  %vm844 = vcmask 254976
  %845 = vst.msk [vmem:[#allocation2 + $0x1a] sm:$0x3] %vm844, %v816
  %vm846 = vcmask 261124
  %847 = vst.msk [vmem:[#allocation2 + $0x18] sm:$0xf0] %vm846, %v816
  %vm848 = vcmask 256000
  %849 = vst.msk [vmem:[#allocation2 + $0x20] sm:$0x7] %vm848, %v821
  %vm850 = vcmask 261125
  %851 = vst.msk [vmem:[#allocation2 + $0x1e] sm:$0xe0] %vm850, %v821
  %vm852 = vcmask 257024
  %853 = vst.msk [vmem:[#allocation2 + $0x26] sm:$0xf] %vm852, %v826
  %vm854 = vcmask 261126
  %855 = vst.msk [vmem:[#allocation2 + $0x24] sm:$0xc0] %vm854, %v826
  %vm856 = vcmask 258048
  %857 = vst.msk [vmem:[#allocation2 + $0x2c] sm:$0x1f] %vm856, %v831
  %v858 = vld [vmem:[#allocation2] sm:$0xff]
  %v859 = vld [vmem:[#allocation2 + $0x8] sm:$0xff]
  %v860 = vld [vmem:[#allocation2 + $0x10] sm:$0xff]
  %v861 = vld [vmem:[#allocation2 + $0x18] sm:$0xff]
  %v862 = vld [vmem:[#allocation2 + $0x20] sm:$0xff]
  %v863 = vld [vmem:[#allocation2 + $0x28] sm:$0xff]
  %v864 = vld [vmem:[#allocation2 + $0x30] sm:$0x1]
  %v865 = vld [vmem:[%s2] sm:$0xff]
  %v866 = vld [vmem:[%s2 + $0x8] sm:$0xff]
  %v867 = vld [vmem:[%s2 + $0x10] sm:$0xff]
  %v868 = vld [vmem:[%s2 + $0x18] sm:$0xff]
  %v869 = vld [vmem:[%s2 + $0x20] sm:$0xff]
  %v870 = vld [vmem:[%s2 + $0x28] sm:$0xff]
  %v871 = vld [vmem:[%s2 + $0x30] sm:$0xff]
  %v872 = vld [vmem:[%s2 + $0x38] sm:$0xff]
  %v873 = vld [vmem:[%s2 + $0x40] sm:$0xff]
  %v874 = vld [vmem:[%s2 + $0x48] sm:$0xff]
  %v875 = vld [vmem:[%s2 + $0x50] sm:$0xff]
  %v876 = vld [vmem:[%s2 + $0x58] sm:$0xff]
  %v877 = vld [vmem:[%s2 + $0x60] sm:$0xff]
  %v878 = vld [vmem:[%s2 + $0x68] sm:$0xff]
  %v879 = vld [vmem:[%s2 + $0x70] sm:$0xff]
  %v880 = vld [vmem:[%s2 + $0x78] sm:$0xff]
  %v881 = vld [vmem:[%s2 + $0x80] sm:$0xff]
  %v882 = vld [vmem:[%s2 + $0x88] sm:$0xff]
  %v883 = vld [vmem:[%s2 + $0x90] sm:$0xff]
  %v884 = vld [vmem:[%s2 + $0x98] sm:$0xff]
  %v885 = vld [vmem:[%s2 + $0xa0] sm:$0xff]
  %v886 = vld [vmem:[%s2 + $0xa8] sm:$0xff]
  %v887 = vld [vmem:[%s2 + $0xb0] sm:$0xff]
  %v888 = vld [vmem:[%s2 + $0xb8] sm:$0xff]
  %v889 = vld [vmem:[%s2 + $0xc0] sm:$0x1]
  %v890 = vld [vmem:[%s2 + $0xc8] sm:$0x1]
  %v891 = vld [vmem:[%s2 + $0xd0] sm:$0x1]
  %v892 = vld [vmem:[%s2 + $0xd8] sm:$0x1]
  %v893 = vld [vmem:[%s3] sm:$0xff]
  %v894 = vld [vmem:[%s3 + $0x8] sm:$0xff]
  %v895 = vld [vmem:[%s3 + $0x10] sm:$0xff]
  %v896 = vld [vmem:[%s3 + $0x18] sm:$0xff]
  %v897 = vld [vmem:[%s3 + $0x20] sm:$0xff]
  %v898 = vld [vmem:[%s3 + $0x28] sm:$0xff]
  %v899 = vld [vmem:[%s3 + $0x30] sm:$0x1]
  %v900 = vld [vmem:[%s4] sm:$0xff]
  %v901 = vld [vmem:[%s4 + $0x8] sm:$0xff]
  %v902 = vld [vmem:[%s4 + $0x10] sm:$0xff]
  %v903 = vld [vmem:[%s4 + $0x18] sm:$0xff]
  %v904 = vld [vmem:[%s4 + $0x20] sm:$0xff]
  %v905 = vld [vmem:[%s4 + $0x28] sm:$0xff]
  %v906 = vld [vmem:[%s4 + $0x30] sm:$0x1]
  %v907 = vld [vmem:[%s5] sm:$0xff]
  %v908 = vld [vmem:[%s5 + $0x8] sm:$0xff]
  %v909 = vld [vmem:[%s5 + $0x10] sm:$0xff]
  %v910 = vld [vmem:[%s5 + $0x18] sm:$0xff]
  %v911 = vld [vmem:[%s5 + $0x20] sm:$0xff]
  %v912 = vld [vmem:[%s5 + $0x28] sm:$0xff]
  %v913 = vld [vmem:[%s5 + $0x30] sm:$0x1]
  %921 = vrot.lane.b32.xlu0 %v900, 32
  %v922 = vpop.permute.xlu0 %921
  %923 = vrot.lane.b32.xlu0 %v901, 32
  %v924 = vpop.permute.xlu0 %923
  %925 = vrot.lane.b32.xlu0 %v902, 32
  %v926 = vpop.permute.xlu0 %925
  %927 = vrot.lane.b32.xlu0 %v903, 32
  %v928 = vpop.permute.xlu0 %927
  %929 = vrot.lane.b32.xlu0 %v904, 32
  %v930 = vpop.permute.xlu0 %929
  %931 = vrot.lane.b32.xlu0 %v905, 32
  %v932 = vpop.permute.xlu0 %931
  %933 = vrot.lane.b32.xlu0 %v906, 32
  %v934 = vpop.permute.xlu0 %933
  %949 = vrot.lane.b32.xlu0 %v858, 64
  %v950 = vpop.permute.xlu0 %949
  %951 = vrot.lane.b32.xlu0 %v859, 64
  %v952 = vpop.permute.xlu0 %951
  %953 = vrot.lane.b32.xlu0 %v860, 64
  %v954 = vpop.permute.xlu0 %953
  %955 = vrot.lane.b32.xlu0 %v861, 64
  %v956 = vpop.permute.xlu0 %955
  %957 = vrot.lane.b32.xlu0 %v862, 64
  %v958 = vpop.permute.xlu0 %957
  %959 = vrot.lane.b32.xlu0 %v863, 64
  %v960 = vpop.permute.xlu0 %959
  %961 = vrot.lane.b32.xlu0 %v864, 64
  %v962 = vpop.permute.xlu0 %961
  %977 = vrot.lane.b32.xlu0 %v907, 96
  %v978 = vpop.permute.xlu0 %977
  %979 = vrot.lane.b32.xlu0 %v908, 96
  %v980 = vpop.permute.xlu0 %979
  %981 = vrot.lane.b32.xlu0 %v909, 96
  %v982 = vpop.permute.xlu0 %981
  %983 = vrot.lane.b32.xlu0 %v910, 96
  %v984 = vpop.permute.xlu0 %983
  %985 = vrot.lane.b32.xlu0 %v911, 96
  %v986 = vpop.permute.xlu0 %985
  %987 = vrot.lane.b32.xlu0 %v912, 96
  %v988 = vpop.permute.xlu0 %987
  %989 = vrot.lane.b32.xlu0 %v913, 96
  %v990 = vpop.permute.xlu0 %989
  %vm998 = vcmask 261120
  %v999 = vsel %vm998, %v893, %v922
  %v1000 = vsel %vm998, %v894, %v924
  %v1001 = vsel %vm998, %v895, %v926
  %v1002 = vsel %vm998, %v896, %v928
  %v1003 = vsel %vm998, %v897, %v930
  %v1004 = vsel %vm998, %v898, %v932
  %v1005 = vsel %vm998, %v899, %v934
  %vm1006 = vcmask 523264
  %v1007 = vsel %vm1006, %v999, %v950
  %v1008 = vsel %vm1006, %v1000, %v952
  %v1009 = vsel %vm1006, %v1001, %v954
  %v1010 = vsel %vm1006, %v1002, %v956
  %v1011 = vsel %vm1006, %v1003, %v958
  %v1012 = vsel %vm1006, %v1004, %v960
  %v1013 = vsel %vm1006, %v1005, %v962
  %vm1014 = vcmask 785408
  %v1015 = vsel %vm1014, %v1007, %v978
  %v1016 = vsel %vm1014, %v1008, %v980
  %v1017 = vsel %vm1014, %v1009, %v982
  %v1018 = vsel %vm1014, %v1010, %v984
  %v1019 = vsel %vm1014, %v1011, %v986
  %v1020 = vsel %vm1014, %v1012, %v988
  %v1021 = vsel %vm1014, %v1013, %v990
  %v1022 = vadd.f32 %v865, %v869
  %v1023 = vadd.f32 %v1022, %v873
  %v1024 = vadd.f32 %v1023, %v877
  %v1025 = vadd.f32 %v1024, %v881
  %v1026 = vadd.f32 %v1025, %v885
  %vm1027 = vcmask 1040384
  %v1028 = vsel %vm1027, %v889, 0.0
  %v1029 = vadd.f32 %v1026, %v1028
  %v1030 = vrot.slane %v1029, 4
  %v1031 = vadd.f32 %v1029, %v1030
  %v1032 = vrot.slane %v1031, 2
  %v1033 = vadd.f32 %v1031, %v1032
  %v1034 = vrot.slane %v1033, 1
  %v1035 = vadd.f32 %v1033, %v1034
  %v1036 = vadd.f32 %v866, %v870
  %v1037 = vadd.f32 %v1036, %v874
  %v1038 = vadd.f32 %v1037, %v878
  %v1039 = vadd.f32 %v1038, %v882
  %v1040 = vadd.f32 %v1039, %v886
  %v1041 = vsel %vm1027, %v890, 0.0
  %v1042 = vadd.f32 %v1040, %v1041
  %v1043 = vrot.slane %v1042, 4
  %v1044 = vadd.f32 %v1042, %v1043
  %v1045 = vrot.slane %v1044, 2
  %v1046 = vadd.f32 %v1044, %v1045
  %v1047 = vrot.slane %v1046, 1
  %v1048 = vadd.f32 %v1046, %v1047
  %v1049 = vadd.f32 %v867, %v871
  %v1050 = vadd.f32 %v1049, %v875
  %v1051 = vadd.f32 %v1050, %v879
  %v1052 = vadd.f32 %v1051, %v883
  %v1053 = vadd.f32 %v1052, %v887
  %v1054 = vsel %vm1027, %v891, 0.0
  %v1055 = vadd.f32 %v1053, %v1054
  %v1056 = vrot.slane %v1055, 4
  %v1057 = vadd.f32 %v1055, %v1056
  %v1058 = vrot.slane %v1057, 2
  %v1059 = vadd.f32 %v1057, %v1058
  %v1060 = vrot.slane %v1059, 1
  %v1061 = vadd.f32 %v1059, %v1060
  %v1062 = vadd.f32 %v868, %v872
  %v1063 = vadd.f32 %v1062, %v876
  %v1064 = vadd.f32 %v1063, %v880
  %v1065 = vadd.f32 %v1064, %v884
  %v1066 = vadd.f32 %v1065, %v888
  %v1067 = vsel %vm1027, %v892, 0.0
  %v1068 = vadd.f32 %v1066, %v1067
  %v1069 = vrot.slane %v1068, 4
  %v1070 = vadd.f32 %v1068, %v1069
  %v1071 = vrot.slane %v1070, 2
  %v1072 = vadd.f32 %v1070, %v1071
  %v1073 = vrot.slane %v1072, 1
  %v1074 = vadd.f32 %v1072, %v1073
  %v1075 = vadd.f32 %v1015, %v1016
  %v1076 = vadd.f32 %v1075, %v1017
  %v1077 = vadd.f32 %v1076, %v1018
  %v1078 = vadd.f32 %v1077, %v1019
  %v1079 = vadd.f32 %v1078, %v1020
  %v1080 = vsel %vm1027, %v1021, 0.0
  %v1081 = vadd.f32 %v1079, %v1080
  %v1082 = vrot.slane %v1081, 4
  %v1083 = vadd.f32 %v1081, %v1082
  %v1084 = vrot.slane %v1083, 2
  %v1085 = vadd.f32 %v1083, %v1084
  %v1086 = vrot.slane %v1085, 1
  %v1087 = vadd.f32 %v1085, %v1086
  %v1088 = vmul.f32 %v1035, 0.020408163
  %v1089 = vmul.f32 %v1048, 0.020408163
  %v1090 = vmul.f32 %v1061, 0.020408163
  %v1091 = vmul.f32 %v1074, 0.020408163
  %v1092 = vmul.f32 %v1087, 0.020408163
  %v1093 = vmul.f32 %v865, %v865
  %v1094 = vmul.f32 %v866, %v866
  %v1095 = vmul.f32 %v867, %v867
  %v1096 = vmul.f32 %v868, %v868
  %v1097 = vmul.f32 %v1015, %v1015
  %v1098 = vmul.f32 %v869, %v869
  %v1099 = vmul.f32 %v870, %v870
  %v1100 = vmul.f32 %v871, %v871
  %v1101 = vmul.f32 %v872, %v872
  %v1102 = vmul.f32 %v1016, %v1016
  %v1103 = vmul.f32 %v873, %v873
  %v1104 = vmul.f32 %v874, %v874
  %v1105 = vmul.f32 %v875, %v875
  %v1106 = vmul.f32 %v876, %v876
  %v1107 = vmul.f32 %v1017, %v1017
  %v1108 = vmul.f32 %v877, %v877
  %v1109 = vmul.f32 %v878, %v878
  %v1110 = vmul.f32 %v879, %v879
  %v1111 = vmul.f32 %v880, %v880
  %v1112 = vmul.f32 %v1018, %v1018
  %v1113 = vmul.f32 %v881, %v881
  %v1114 = vmul.f32 %v882, %v882
  %v1115 = vmul.f32 %v883, %v883
  %v1116 = vmul.f32 %v884, %v884
  %v1117 = vmul.f32 %v1019, %v1019
  %v1118 = vmul.f32 %v885, %v885
  %v1119 = vmul.f32 %v886, %v886
  %v1120 = vmul.f32 %v887, %v887
  %v1121 = vmul.f32 %v888, %v888
  %v1122 = vmul.f32 %v1020, %v1020
  %v1123 = vmul.f32 %v889, %v889
  %v1124 = vmul.f32 %v890, %v890
  %v1125 = vmul.f32 %v891, %v891
  %v1126 = vmul.f32 %v892, %v892
  %v1127 = vmul.f32 %v1021, %v1021
  %v1128 = vadd.f32 %v1093, %v1098
  %v1129 = vadd.f32 %v1128, %v1103
  %v1130 = vadd.f32 %v1129, %v1108
  %v1131 = vadd.f32 %v1130, %v1113
  %v1132 = vadd.f32 %v1131, %v1118
  %v1133 = vsel %vm1027, %v1123, 0.0
  %v1134 = vadd.f32 %v1132, %v1133
  %v1135 = vrot.slane %v1134, 4
  %v1136 = vadd.f32 %v1134, %v1135
  %v1137 = vrot.slane %v1136, 2
  %v1138 = vadd.f32 %v1136, %v1137
  %v1139 = vrot.slane %v1138, 1
  %v1140 = vadd.f32 %v1138, %v1139
  %v1141 = vadd.f32 %v1094, %v1099
  %v1142 = vadd.f32 %v1141, %v1104
  %v1143 = vadd.f32 %v1142, %v1109
  %v1144 = vadd.f32 %v1143, %v1114
  %v1145 = vadd.f32 %v1144, %v1119
  %v1146 = vsel %vm1027, %v1124, 0.0
  %v1147 = vadd.f32 %v1145, %v1146
  %v1148 = vrot.slane %v1147, 4
  %v1149 = vadd.f32 %v1147, %v1148
  %v1150 = vrot.slane %v1149, 2
  %v1151 = vadd.f32 %v1149, %v1150
  %v1152 = vrot.slane %v1151, 1
  %v1153 = vadd.f32 %v1151, %v1152
  %v1154 = vadd.f32 %v1095, %v1100
  %v1155 = vadd.f32 %v1154, %v1105
  %v1156 = vadd.f32 %v1155, %v1110
  %v1157 = vadd.f32 %v1156, %v1115
  %v1158 = vadd.f32 %v1157, %v1120
  %v1159 = vsel %vm1027, %v1125, 0.0
  %v1160 = vadd.f32 %v1158, %v1159
  %v1161 = vrot.slane %v1160, 4
  %v1162 = vadd.f32 %v1160, %v1161
  %v1163 = vrot.slane %v1162, 2
  %v1164 = vadd.f32 %v1162, %v1163
  %v1165 = vrot.slane %v1164, 1
  %v1166 = vadd.f32 %v1164, %v1165
  %v1167 = vadd.f32 %v1096, %v1101
  %v1168 = vadd.f32 %v1167, %v1106
  %v1169 = vadd.f32 %v1168, %v1111
  %v1170 = vadd.f32 %v1169, %v1116
  %v1171 = vadd.f32 %v1170, %v1121
  %v1172 = vsel %vm1027, %v1126, 0.0
  %v1173 = vadd.f32 %v1171, %v1172
  %v1174 = vrot.slane %v1173, 4
  %v1175 = vadd.f32 %v1173, %v1174
  %v1176 = vrot.slane %v1175, 2
  %v1177 = vadd.f32 %v1175, %v1176
  %v1178 = vrot.slane %v1177, 1
  %v1179 = vadd.f32 %v1177, %v1178
  %v1180 = vadd.f32 %v1097, %v1102
  %v1181 = vadd.f32 %v1180, %v1107
  %v1182 = vadd.f32 %v1181, %v1112
  %v1183 = vadd.f32 %v1182, %v1117
  %v1184 = vadd.f32 %v1183, %v1122
  %v1185 = vsel %vm1027, %v1127, 0.0
  %v1186 = vadd.f32 %v1184, %v1185
  %v1187 = vrot.slane %v1186, 4
  %v1188 = vadd.f32 %v1186, %v1187
  %v1189 = vrot.slane %v1188, 2
  %v1190 = vadd.f32 %v1188, %v1189
  %v1191 = vrot.slane %v1190, 1
  %v1192 = vadd.f32 %v1190, %v1191
  %v1193 = vmul.f32 %v1140, 0.020408163
  %v1194 = vmul.f32 %v1153, 0.020408163
  %v1195 = vmul.f32 %v1166, 0.020408163
  %v1196 = vmul.f32 %v1179, 0.020408163
  %v1197 = vmul.f32 %v1192, 0.020408163
  %v1198 = vmul.f32 %v1088, %v1088
  %v1199 = vmul.f32 %v1089, %v1089
  %v1200 = vmul.f32 %v1090, %v1090
  %v1201 = vmul.f32 %v1091, %v1091
  %v1202 = vmul.f32 %v1092, %v1092
  %v1203 = vsub.f32 %v1193, %v1198
  %v1204 = vsub.f32 %v1194, %v1199
  %v1205 = vsub.f32 %v1195, %v1200
  %v1206 = vsub.f32 %v1196, %v1201
  %v1207 = vsub.f32 %v1197, %v1202
  %v1208 = vmax.f32 %v1203, 0.0
  %v1209 = vmax.f32 %v1204, 0.0
  %v1210 = vmax.f32 %v1205, 0.0
  %v1211 = vmax.f32 %v1206, 0.0
  %v1212 = vmax.f32 %v1207, 0.0
  %v1213 = vadd.f32 %v1208, 1e-05
  %v1214 = vadd.f32 %v1209, 1e-05
  %v1215 = vadd.f32 %v1210, 1e-05
  %v1216 = vadd.f32 %v1211, 1e-05
  %v1217 = vadd.f32 %v1212, 1e-05
  %v1218 = vrsqrt.pop %v1213
  %v1219 = vrsqrt.pop %v1214
  %v1220 = vrsqrt.pop %v1215
  %v1221 = vrsqrt.pop %v1216
  %v1222 = vrsqrt.pop %v1217
  %v1223 = vsub.f32 %v865, %v1088
  %v1224 = vsub.f32 %v866, %v1089
  %v1225 = vsub.f32 %v867, %v1090
  %v1226 = vsub.f32 %v868, %v1091
  %v1227 = vsub.f32 %v1015, %v1092
  %v1228 = vsub.f32 %v869, %v1088
  %v1229 = vsub.f32 %v870, %v1089
  %v1230 = vsub.f32 %v871, %v1090
  %v1231 = vsub.f32 %v872, %v1091
  %v1232 = vsub.f32 %v1016, %v1092
  %v1233 = vsub.f32 %v873, %v1088
  %v1234 = vsub.f32 %v874, %v1089
  %v1235 = vsub.f32 %v875, %v1090
  %v1236 = vsub.f32 %v876, %v1091
  %v1237 = vsub.f32 %v1017, %v1092
  %v1238 = vsub.f32 %v877, %v1088
  %v1239 = vsub.f32 %v878, %v1089
  %v1240 = vsub.f32 %v879, %v1090
  %v1241 = vsub.f32 %v880, %v1091
  %v1242 = vsub.f32 %v1018, %v1092
  %v1243 = vsub.f32 %v881, %v1088
  %v1244 = vsub.f32 %v882, %v1089
  %v1245 = vsub.f32 %v883, %v1090
  %v1246 = vsub.f32 %v884, %v1091
  %v1247 = vsub.f32 %v1019, %v1092
  %v1248 = vsub.f32 %v885, %v1088
  %v1249 = vsub.f32 %v886, %v1089
  %v1250 = vsub.f32 %v887, %v1090
  %v1251 = vsub.f32 %v888, %v1091
  %v1252 = vsub.f32 %v1020, %v1092
  %v1253 = vsub.f32 %v889, %v1088
  %v1254 = vsub.f32 %v890, %v1089
  %v1255 = vsub.f32 %v891, %v1090
  %v1256 = vsub.f32 %v892, %v1091
  %v1257 = vsub.f32 %v1021, %v1092
  %v1258 = vld [vmem:[%s6] sm:$0x1f]
  %v1260 = vlaneseq
  %v1261 = vshrl.u32 %v1260, 7
  %v1262 = vsub.s32 0, %v1261
  %v1263 = vrot.slane %v1258, %v1262
  %v1264 = vlaneseq
  %v1265 = vshrl.u32 %v1264, 7
  %v1266 = vsub.s32 1, %v1265
  %v1267 = vrot.slane %v1258, %v1266
  %v1268 = vlaneseq
  %v1269 = vshrl.u32 %v1268, 7
  %v1270 = vsub.s32 2, %v1269
  %v1271 = vrot.slane %v1258, %v1270
  %v1272 = vlaneseq
  %v1273 = vshrl.u32 %v1272, 7
  %v1274 = vsub.s32 3, %v1273
  %v1275 = vrot.slane %v1258, %v1274
  %v1276 = vlaneseq
  %v1277 = vshrl.u32 %v1276, 7
  %v1278 = vsub.s32 4, %v1277
  %v1279 = vrot.slane %v1258, %v1278
  %v1285 = vmul.f32 %v1218, %v1263
  %v1286 = vmul.f32 %v1219, %v1267
  %v1287 = vmul.f32 %v1220, %v1271
  %v1288 = vmul.f32 %v1221, %v1275
  %v1289 = vmul.f32 %v1222, %v1279
  %v1290 = vlaneseq
  %v1291 = vshrl.u32 %v1290, 7
  %v1292 = vsub.s32 0, %v1291
  %v1293 = vrot.slane %v1285, %v1292
  %v1294 = vlaneseq
  %v1295 = vshrl.u32 %v1294, 7
  %v1296 = vsub.s32 0, %v1295
  %v1297 = vrot.slane %v1286, %v1296
  %v1298 = vlaneseq
  %v1299 = vshrl.u32 %v1298, 7
  %v1300 = vsub.s32 0, %v1299
  %v1301 = vrot.slane %v1287, %v1300
  %v1302 = vlaneseq
  %v1303 = vshrl.u32 %v1302, 7
  %v1304 = vsub.s32 0, %v1303
  %v1305 = vrot.slane %v1288, %v1304
  %v1306 = vlaneseq
  %v1307 = vshrl.u32 %v1306, 7
  %v1308 = vsub.s32 0, %v1307
  %v1309 = vrot.slane %v1289, %v1308
  %v1310 = vmul.f32 %v1223, %v1293
  %v1311 = vmul.f32 %v1224, %v1297
  %v1312 = vmul.f32 %v1225, %v1301
  %v1313 = vmul.f32 %v1226, %v1305
  %v1314 = vmul.f32 %v1227, %v1309
  %v1315 = vmul.f32 %v1228, %v1293
  %v1316 = vmul.f32 %v1229, %v1297
  %v1317 = vmul.f32 %v1230, %v1301
  %v1318 = vmul.f32 %v1231, %v1305
  %v1319 = vmul.f32 %v1232, %v1309
  %v1320 = vmul.f32 %v1233, %v1293
  %v1321 = vmul.f32 %v1234, %v1297
  %v1322 = vmul.f32 %v1235, %v1301
  %v1323 = vmul.f32 %v1236, %v1305
  %v1324 = vmul.f32 %v1237, %v1309
  %v1325 = vmul.f32 %v1238, %v1293
  %v1326 = vmul.f32 %v1239, %v1297
  %v1327 = vmul.f32 %v1240, %v1301
  %v1328 = vmul.f32 %v1241, %v1305
  %v1329 = vmul.f32 %v1242, %v1309
  %v1330 = vmul.f32 %v1243, %v1293
  %v1331 = vmul.f32 %v1244, %v1297
  %v1332 = vmul.f32 %v1245, %v1301
  %v1333 = vmul.f32 %v1246, %v1305
  %v1334 = vmul.f32 %v1247, %v1309
  %v1335 = vmul.f32 %v1248, %v1293
  %v1336 = vmul.f32 %v1249, %v1297
  %v1337 = vmul.f32 %v1250, %v1301
  %v1338 = vmul.f32 %v1251, %v1305
  %v1339 = vmul.f32 %v1252, %v1309
  %v1340 = vmul.f32 %v1253, %v1293
  %v1341 = vmul.f32 %v1254, %v1297
  %v1342 = vmul.f32 %v1255, %v1301
  %v1343 = vmul.f32 %v1256, %v1305
  %v1344 = vmul.f32 %v1257, %v1309
  %v1345 = vld [vmem:[%s7] sm:$0x1f]
  %v1347 = vlaneseq
  %v1348 = vshrl.u32 %v1347, 7
  %v1349 = vsub.s32 0, %v1348
  %v1350 = vrot.slane %v1345, %v1349
  %v1351 = vlaneseq
  %v1352 = vshrl.u32 %v1351, 7
  %v1353 = vsub.s32 1, %v1352
  %v1354 = vrot.slane %v1345, %v1353
  %v1355 = vlaneseq
  %v1356 = vshrl.u32 %v1355, 7
  %v1357 = vsub.s32 2, %v1356
  %v1358 = vrot.slane %v1345, %v1357
  %v1359 = vlaneseq
  %v1360 = vshrl.u32 %v1359, 7
  %v1361 = vsub.s32 3, %v1360
  %v1362 = vrot.slane %v1345, %v1361
  %v1363 = vlaneseq
  %v1364 = vshrl.u32 %v1363, 7
  %v1365 = vsub.s32 4, %v1364
  %v1366 = vrot.slane %v1345, %v1365
  %v1372 = vadd.f32 %v1310, %v1350
  %v1373 = vadd.f32 %v1311, %v1354
  %v1374 = vadd.f32 %v1312, %v1358
  %v1375 = vadd.f32 %v1313, %v1362
  %v1376 = vadd.f32 %v1314, %v1366
  %v1377 = vadd.f32 %v1315, %v1350
  %v1378 = vadd.f32 %v1316, %v1354
  %v1379 = vadd.f32 %v1317, %v1358
  %v1380 = vadd.f32 %v1318, %v1362
  %v1381 = vadd.f32 %v1319, %v1366
  %v1382 = vadd.f32 %v1320, %v1350
  %v1383 = vadd.f32 %v1321, %v1354
  %v1384 = vadd.f32 %v1322, %v1358
  %v1385 = vadd.f32 %v1323, %v1362
  %v1386 = vadd.f32 %v1324, %v1366
  %v1387 = vadd.f32 %v1325, %v1350
  %v1388 = vadd.f32 %v1326, %v1354
  %v1389 = vadd.f32 %v1327, %v1358
  %v1390 = vadd.f32 %v1328, %v1362
  %v1391 = vadd.f32 %v1329, %v1366
  %v1392 = vadd.f32 %v1330, %v1350
  %v1393 = vadd.f32 %v1331, %v1354
  %v1394 = vadd.f32 %v1332, %v1358
  %v1395 = vadd.f32 %v1333, %v1362
  %v1396 = vadd.f32 %v1334, %v1366
  %v1397 = vadd.f32 %v1335, %v1350
  %v1398 = vadd.f32 %v1336, %v1354
  %v1399 = vadd.f32 %v1337, %v1358
  %v1400 = vadd.f32 %v1338, %v1362
  %v1401 = vadd.f32 %v1339, %v1366
  %v1402 = vadd.f32 %v1340, %v1350
  %v1403 = vadd.f32 %v1341, %v1354
  %v1404 = vadd.f32 %v1342, %v1358
  %v1405 = vadd.f32 %v1343, %v1362
  %v1406 = vadd.f32 %v1344, %v1366
  %1407 = vst [vmem:[%s8] sm:$0xff] %v1372
  %1408 = vst [vmem:[%s8 + $0x8] sm:$0xff] %v1373
  %1409 = vst [vmem:[%s8 + $0x10] sm:$0xff] %v1374
  %1410 = vst [vmem:[%s8 + $0x18] sm:$0xff] %v1375
  %1411 = vst [vmem:[%s8 + $0x20] sm:$0xff] %v1376
  %1412 = vst [vmem:[%s8 + $0x28] sm:$0xff] %v1377
  %1413 = vst [vmem:[%s8 + $0x30] sm:$0xff] %v1378
  %1414 = vst [vmem:[%s8 + $0x38] sm:$0xff] %v1379
  %1415 = vst [vmem:[%s8 + $0x40] sm:$0xff] %v1380
  %1416 = vst [vmem:[%s8 + $0x48] sm:$0xff] %v1381
  %1417 = vst [vmem:[%s8 + $0x50] sm:$0xff] %v1382
  %1418 = vst [vmem:[%s8 + $0x58] sm:$0xff] %v1383
  %1419 = vst [vmem:[%s8 + $0x60] sm:$0xff] %v1384
  %1420 = vst [vmem:[%s8 + $0x68] sm:$0xff] %v1385
  %1421 = vst [vmem:[%s8 + $0x70] sm:$0xff] %v1386
  %1422 = vst [vmem:[%s8 + $0x78] sm:$0xff] %v1387
  %1423 = vst [vmem:[%s8 + $0x80] sm:$0xff] %v1388
  %1424 = vst [vmem:[%s8 + $0x88] sm:$0xff] %v1389
  %1425 = vst [vmem:[%s8 + $0x90] sm:$0xff] %v1390
  %1426 = vst [vmem:[%s8 + $0x98] sm:$0xff] %v1391
  %1427 = vst [vmem:[%s8 + $0xa0] sm:$0xff] %v1392
  %1428 = vst [vmem:[%s8 + $0xa8] sm:$0xff] %v1393
  %1429 = vst [vmem:[%s8 + $0xb0] sm:$0xff] %v1394
  %1430 = vst [vmem:[%s8 + $0xb8] sm:$0xff] %v1395
  %1431 = vst [vmem:[%s8 + $0xc0] sm:$0xff] %v1396
  %1432 = vst [vmem:[%s8 + $0xc8] sm:$0xff] %v1397
  %1433 = vst [vmem:[%s8 + $0xd0] sm:$0xff] %v1398
  %1434 = vst [vmem:[%s8 + $0xd8] sm:$0xff] %v1399
  %1435 = vst [vmem:[%s8 + $0xe0] sm:$0xff] %v1400
  %1436 = vst [vmem:[%s8 + $0xe8] sm:$0xff] %v1401
  %1437 = vst [vmem:[%s8 + $0xf0] sm:$0x1] %v1402
  %1438 = vst [vmem:[%s8 + $0xf8] sm:$0x1] %v1403
  %1439 = vst [vmem:[%s8 + $0x100] sm:$0x1] %v1404
  %1440 = vst [vmem:[%s8 + $0x108] sm:$0x1] %v1405
  %1441 = vst [vmem:[%s8 + $0x110] sm:$0x1] %v1406
  // Predicated region
  $region34: #{forward.1} parent=0 // pred_check
    _
  $region35: #{forward.1} parent=0 // pred_check_branch
    %1443 = sbr.rel (0) target = $region37
  $region36: #{forward.1} parent=0 // pred_region
    _
  $region37: #{forward.1} parent=0 // pred_fallthru
    _
  // Predicated region
  $region38: #{forward.1} parent=0 // pred_check
    _
  $region39: #{forward.1} parent=0 // pred_check_branch
    %1445 = sbr.rel (0) target = $region41
  $region40: #{forward.1} parent=0 // pred_region
    _
  $region41: #{forward.1} parent=0 // pred_fallthru
    _

</llo_original>
